<compile_context>
chip_gen: v6e
topology: v6e:2x2x1
jax: 0.10.0
libtpu: 0.0.40
codegen_flags: <defaults>
</compile_context>

<pallas_src>
import functools
import math

import numpy as np
import jax
import jax.numpy as jnp
from jax.experimental import pallas as pl
from jax.experimental.pallas import tpu as pltpu

C_IN = 512                 # module hard-codes 512 input channels
NUM_CLASS = 19
NC_PAD = 128               # head output channels padded to a lane-dense width
POOL_SCALES = (1, 2, 3, 6)
BN_EPS = 1e-5


# --------------------------- Pallas kernels ---------------------------------

def _psp_kernel(x_ref, w_ref, scale_ref, shift_ref, o_ref):
    # One PSP branch per grid step: 1x1 Conv (bf16 MXU) + folded BN + ReLU.
    acc = jnp.dot(x_ref[0], w_ref[0], preferred_element_type=jnp.float32)
    o_ref[0] = jnp.maximum(acc * scale_ref[0] + shift_ref[0], 0.0)


def psp_branches(pooled, w, scale, shift):
    # pooled: (4, Mp, 512) bf16 ; w: (4, 512, 512) bf16 ; scale/shift: (4, 1, 512) f32
    s, mp, c = pooled.shape
    return pl.pallas_call(
        _psp_kernel,
        out_shape=jax.ShapeDtypeStruct((s, mp, c), jnp.float32),
        grid=(s,),
        in_specs=[
            pl.BlockSpec((1, mp, c), lambda i: (i, 0, 0)),
            pl.BlockSpec((1, c, c), lambda i: (i, 0, 0)),
            pl.BlockSpec((1, 1, c), lambda i: (i, 0, 0)),
            pl.BlockSpec((1, 1, c), lambda i: (i, 0, 0)),
        ],
        out_specs=pl.BlockSpec((1, mp, c), lambda i: (i, 0, 0)),
        compiler_params=pltpu.CompilerParams(
            dimension_semantics=("parallel",)),
    )(pooled, w, scale, shift)


def _conv_head_kernel(x_ref, w1_ref, scale_ref, shift_ref, w2_ref, b2_ref,
                      o_ref, acc_ref, *, wp):
    # x_ref   : (1, S_pad, ck) bf16  -- zero-padded image, spatially flattened
    # w1_ref  : (9, ck, 512)   bf16  -- 3x3 conv weight, one slice per tap
    # acc_ref : (S_pad, 512)   f32   -- resident accumulator over cin chunks
    # o_ref   : (1, S_pad, 128) f32  -- BN+ReLU+1x1-conv logits (padded classes)
    k = pl.program_id(1)

    @pl.when(k == 0)
    def _():
        acc_ref[...] = jnp.zeros_like(acc_ref)

    x = x_ref[0]                                     # (S_pad, ck)
    s_pad = acc_ref.shape[0]
    for t in range(9):                               # unrolled taps of the 3x3 conv
        ki, kj = t // 3, t % 3
        delta = (ki - 1) * wp + (kj - 1)             # uniform flat offset of this tap
        y = jnp.dot(x, w1_ref[t], preferred_element_type=jnp.float32)   # (S_pad, 512)
        dst0 = max(0, -delta)
        src0 = max(0, delta)
        length = s_pad - abs(delta)
        # acc[p] += y[p + delta]; only pad-ring rows fall outside / wrap, and they
        # are discarded in glue, so this is exactly the padding=1 conv.
        acc_ref[dst0:dst0 + length, :] += y[src0:src0 + length, :]

    @pl.when(k == pl.num_programs(1) - 1)
    def _():
        h = jnp.maximum(acc_ref[...] * scale_ref[...] + shift_ref[...], 0.0)
        o_ref[0] = (jnp.dot(h.astype(jnp.bfloat16), w2_ref[...],
                            preferred_element_type=jnp.float32) + b2_ref[...])


def conv_head(x_flat, wp, w1, scale, shift, w2p, b2p, *, ck=512):
    # x_flat: (N, S_pad, Cc) bf16 with S_pad = (H+2)*(W+2); w1: (9, Cc, 512) bf16.
    n, s_pad, c_cat = x_flat.shape
    c1 = w1.shape[2]
    ncp = w2p.shape[1]
    assert c_cat % ck == 0
    nk = c_cat // ck
    kernel = functools.partial(_conv_head_kernel, wp=wp)
    return pl.pallas_call(
        kernel,
        out_shape=jax.ShapeDtypeStruct((n, s_pad, ncp), jnp.float32),
        grid=(n, nk),                                 # batch parallel, cin reduction
        in_specs=[
            pl.BlockSpec((1, s_pad, ck), lambda b, k: (b, 0, k)),   # activations
            pl.BlockSpec((9, ck, c1), lambda b, k: (0, k, 0)),      # 3x3 weight slice
            pl.BlockSpec((1, c1), lambda b, k: (0, 0)),             # folded BN scale
            pl.BlockSpec((1, c1), lambda b, k: (0, 0)),             # folded BN shift
            pl.BlockSpec((c1, ncp), lambda b, k: (0, 0)),           # 1x1 weight (padded)
            pl.BlockSpec((1, ncp), lambda b, k: (0, 0)),            # 1x1 bias (padded)
        ],
        out_specs=pl.BlockSpec((1, s_pad, ncp), lambda b, k: (b, 0, 0)),
        scratch_shapes=[pltpu.VMEM((s_pad, c1), jnp.float32)],
        compiler_params=pltpu.CompilerParams(
            dimension_semantics=("parallel", "arbitrary"),
            vmem_limit_bytes=32 << 20),               # sized to need; safe on v7x
    )(x_flat, w1, scale[None, :], shift[None, :], w2p, b2p[None, :])


def _upsample_softmax_kernel(lg_ref, wh_ref, ww_ref, o_ref):
    # lg_ref: (1, nc, W, H) logits (channels leading); wh_ref: (TO, H); ww_ref: (OW, W)
    # o_ref : (1, nc, TO, OW) -- final NCHW probabilities for this row tile.
    nc = lg_ref.shape[1]
    lg = lg_ref[0]                                    # (nc, W, H)
    to, h_in = wh_ref.shape
    ow, w_in = ww_ref.shape
    wh = jnp.broadcast_to(wh_ref[...][None, :, :], (nc, to, h_in))
    ww = jnp.broadcast_to(ww_ref[...][None, :, :], (nc, ow, w_in))
    t = jnp.einsum('coh,cwh->cow', wh, lg, preferred_element_type=jnp.float32)
    up = jnp.einsum('cow,cpw->cop', t, ww, preferred_element_type=jnp.float32)  # (nc,TO,OW)
    # Channel softmax: channels on the leading dim -> pure VPU cross-vreg reductions,
    # exp/mul lane-dense over output pixels.
    m = jnp.max(up, axis=0, keepdims=True)
    e = jnp.exp(up - m)
    s = jnp.sum(e, axis=0, keepdims=True)
    r = pl.reciprocal(s, approx=True)
    r = r * (2.0 - s * r)                             # one Newton step -> f32 accuracy
    o_ref[0] = e * r


def _row_tile(oh, cap=256):
    best, d = 8, 8
    while d <= min(oh, cap):
        if oh % d == 0:
            best = d
        d += 8
    return best


def upsample_softmax(lg_cwh, wh, ww):
    # lg_cwh: (N, nc, W, H) f32 ; wh: (8H, H) ; ww: (8W, W)
    n, nc, w_in, h_in = lg_cwh.shape
    oh, ow = wh.shape[0], ww.shape[0]
    to = _row_tile(oh)
    return pl.pallas_call(
        _upsample_softmax_kernel,
        out_shape=jax.ShapeDtypeStruct((n, nc, oh, ow), jnp.float32),
        grid=(n, oh // to),
        in_specs=[
            pl.BlockSpec((1, nc, w_in, h_in), lambda b, r: (b, 0, 0, 0)),
            pl.BlockSpec((to, h_in), lambda b, r: (r, 0)),
            pl.BlockSpec((ow, w_in), lambda b, r: (0, 0)),
        ],
        out_specs=pl.BlockSpec((1, nc, to, ow), lambda b, r: (b, 0, r, 0)),
        compiler_params=pltpu.CompilerParams(
            dimension_semantics=("parallel", "parallel")),
    )(lg_cwh, wh, ww)


# --------------------------- JAX glue ----------------------------------------

def adaptive_avg_pool(x, s):
    # Exact nn.AdaptiveAvgPool2d bin boundaries (start=floor, end=ceil); NHWC.
    n, h, w, c = x.shape
    rows = []
    for i in range(s):
        h0, h1 = (i * h) // s, math.ceil((i + 1) * h / s)
        cols = []
        for j in range(s):
            w0, w1 = (j * w) // s, math.ceil((j + 1) * w / s)
            cols.append(jnp.mean(x[:, h0:h1, w0:w1, :], axis=(1, 2)))
        rows.append(jnp.stack(cols, axis=1))
    return jnp.stack(rows, axis=1)                    # (N, s, s, C)


def _bilinear_matrix(out_size, in_size):
    # Weights for F.interpolate(mode='bilinear', align_corners=False).
    m = np.zeros((out_size, in_size), dtype=np.float32)
    scale = in_size / out_size
    for o in range(out_size):
        src = max(scale * (o + 0.5) - 0.5, 0.0)
        i0 = int(math.floor(src))
        i1 = min(i0 + 1, in_size - 1)
        l1 = src - i0
        m[o, i0] += 1.0 - l1
        m[o, i1] += l1
    return jnp.asarray(m)


def bilinear_upsample(x, out_h, out_w):
    _, h, w, _ = x.shape
    wh = _bilinear_matrix(out_h, h)
    ww = _bilinear_matrix(out_w, w)
    return jnp.einsum("Oh,Pw,nhwc->nOPc", wh, ww, x)


def ppm_decoder_forward(x_nchw, params):
    x = jnp.transpose(x_nchw, (0, 2, 3, 1)).astype(jnp.float32)   # NHWC
    n, h, w, c = x.shape

    # ---- PSP branches: one fused gridded kernel over the 4 pool scales ----
    m_rows = [n * s * s for s in POOL_SCALES]
    mp = max(m_rows)
    pooled = []
    for s in POOL_SCALES:
        p = adaptive_avg_pool(x, s).reshape(n * s * s, c)
        pooled.append(jnp.pad(p, ((0, mp - p.shape[0]), (0, 0))))
    pooled = jnp.stack(pooled).astype(jnp.bfloat16)               # (4, Mp, C)
    psp_h = psp_branches(pooled, params["psp_w"],
                         params["psp_scale"], params["psp_shift"])  # (4, Mp, C) f32

    psp_out = [x]
    for idx, s in enumerate(POOL_SCALES):
        hb = psp_h[idx, :n * s * s, :].reshape(n, s, s, c)
        psp_out.append(bilinear_upsample(hb, h, w))
    cat = jnp.concatenate(psp_out, axis=-1)                        # (N, H, W, 5*C)
    c_cat = cat.shape[-1]

    # ---- conv_final: 3x3 conv as in-kernel shifted taps on the padded map ----
    hp, wp = h + 2, w + 2
    pad = jnp.pad(cat, ((0, 0), (1, 1), (1, 1), (0, 0)))
    x_flat = pad.reshape(n, hp * wp, c_cat).astype(jnp.bfloat16)   # (N, (H+2)(W+2), 5C)
    logits_pad = conv_head(x_flat, wp,
                           params["w1"], params["scale_f"], params["shift_f"],
                           params["w2"], params["b2"])             # (N, (H+2)(W+2), 128)
    logits = logits_pad.reshape(n, hp, wp, NC_PAD)[:, 1:h + 1, 1:w + 1, :NUM_CLASS]

    # ---- fused 8x bilinear upsample + channel softmax, emits NCHW directly ----
    lg_cwh = jnp.transpose(logits, (0, 3, 2, 1))                   # (N, nc, W, H)
    wh = _bilinear_matrix(8 * h, h)
    ww = _bilinear_matrix(8 * w, w)
    return upsample_softmax(lg_cwh, wh, ww)                        # (N, nc, 8H, 8W)


# --------------------------- Parameter init ----------------------------------

def _fold_bn(key, c):
    k1, k2, k3, k4 = jax.random.split(key, 4)
    gamma = 1.0 + 0.1 * jax.random.normal(k1, (c,), jnp.float32)
    beta = 0.1 * jax.random.normal(k2, (c,), jnp.float32)
    mean = 0.1 * jax.random.normal(k3, (c,), jnp.float32)
    var = jnp.abs(1.0 + 0.1 * jax.random.normal(k4, (c,), jnp.float32))
    scale = gamma * jax.lax.rsqrt(var + BN_EPS)
    shift = beta - mean * scale
    return scale, shift


def init_params(key):
    n_scales = len(POOL_SCALES)
    c_cat = C_IN * (1 + n_scales)                                  # 2560
    keys = jax.random.split(key, 2 * n_scales + 4)

    ws, scs, shs = [], [], []
    for i in range(n_scales):
        # nn.Conv2d(512, 512, 1, bias=False): torch weight (Cout, Cin, 1, 1)
        w_t = jax.random.normal(keys[2 * i], (C_IN, C_IN), jnp.float32) / math.sqrt(C_IN)
        scale, shift = _fold_bn(keys[2 * i + 1], C_IN)
        ws.append(w_t.T)                                           # stored as (Cin, Cout)
        scs.append(scale)
        shs.append(shift)
    params = {
        "psp_w": jnp.stack(ws).astype(jnp.bfloat16),               # (4, Cin, Cout)
        "psp_scale": jnp.stack(scs)[:, None, :],                   # (4, 1, 512)
        "psp_shift": jnp.stack(shs)[:, None, :],
    }

    kw1, kbn, kw2, kb2 = keys[2 * n_scales:]
    # nn.Conv2d(2560, 512, 3, padding=1, bias=False): torch weight (512, 2560, 3, 3)
    w1_t = jax.random.normal(kw1, (C_IN, c_cat, 3, 3), jnp.float32) / math.sqrt(9 * c_cat)
    params["w1"] = (jnp.transpose(w1_t, (2, 3, 1, 0))              # (3,3,Cin,Cout)
                    .reshape(9, c_cat, C_IN).astype(jnp.bfloat16))  # tap-major
    params["scale_f"], params["shift_f"] = _fold_bn(kbn, C_IN)
    # nn.Conv2d(512, num_class, 1) with bias: torch weight (19, 512, 1, 1);
    # padded 19 -> 128 with zero columns for lane-dense stores (sliced off in glue).
    w2_t = jax.random.normal(kw2, (NUM_CLASS, C_IN), jnp.float32) / math.sqrt(C_IN)
    b2 = 0.1 * jax.random.normal(kb2, (NUM_CLASS,), jnp.float32)
    w2p = jnp.zeros((C_IN, NC_PAD), jnp.float32).at[:, :NUM_CLASS].set(w2_t.T)
    b2p = jnp.zeros((NC_PAD,), jnp.float32).at[:NUM_CLASS].set(b2)
    params["w2"] = w2p.astype(jnp.bfloat16)
    params["b2"] = b2p
    return params


# --------------------------- Main ---------------------------------------------

if __name__ == "__main__":
    N, H, W = 2, 8, 8                                 # channels fixed at 512 by the module
    key = jax.random.PRNGKey(0)
    kx, kp = jax.random.split(key)
    x = jax.random.normal(kx, (N, C_IN, H, W), dtype=jnp.float32)  # NCHW like PyTorch
    params = init_params(kp)

    out = ppm_decoder_forward(x, params)
    out = jax.block_until_ready(out)

    assert out.shape == (N, NUM_CLASS, H * 8, W * 8), out.shape
    assert bool(jnp.all(jnp.isfinite(out)))
    # softmax over the class/channel dim must sum to 1 per pixel
    assert bool(jnp.allclose(jnp.sum(out, axis=1), 1.0, atol=1e-3))

    print("KERNEL_OK")
</pallas_src>

<mosaic_0001>
module attributes {stable_mosaic.version = 11 : i64} {
  func.func @_psp_kernel(%arg0: i32, %arg1: memref<1x72x512xbf16, #tpu.memory_space<vmem>>, %arg2: memref<1x512x512xbf16, #tpu.memory_space<vmem>>, %arg3: memref<1x1x512xf32, #tpu.memory_space<vmem>>, %arg4: memref<1x1x512xf32, #tpu.memory_space<vmem>>, %arg5: memref<1x72x512xf32, #tpu.memory_space<vmem>>) attributes {dimension_semantics = [#tpu.dimension_semantics<parallel>], iteration_bounds = array<i64: 4>, scalar_prefetch = 0 : i64, scratch_operands = 0 : i64, tpu.core_type = #tpu.core_type<tc>, window_params = [{transform_indices = @transform_0, window_bounds = array<i64: 1, 72, 512>}, {transform_indices = @transform_1, window_bounds = array<i64: 1, 512, 512>}, {transform_indices = @transform_2, window_bounds = array<i64: 1, 1, 512>}, {transform_indices = @transform_3, window_bounds = array<i64: 1, 1, 512>}, {transform_indices = @transform_4, window_bounds = array<i64: 1, 72, 512>}]} {
    %c0 = arith.constant 0 : index
    %c0_0 = arith.constant 0 : index
    %c0_1 = arith.constant 0 : index
    %0 = vector.load %arg1[%c0, %c0_0, %c0_1] : memref<1x72x512xbf16, #tpu.memory_space<vmem>>, vector<1x72x512xbf16>
    %1 = vector.shape_cast %0 : vector<1x72x512xbf16> to vector<72x512xbf16>
    %c0_2 = arith.constant 0 : index
    %c0_3 = arith.constant 0 : index
    %c0_4 = arith.constant 0 : index
    %2 = vector.load %arg2[%c0_2, %c0_3, %c0_4] : memref<1x512x512xbf16, #tpu.memory_space<vmem>>, vector<1x512x512xbf16>
    %3 = vector.shape_cast %2 : vector<1x512x512xbf16> to vector<512x512xbf16>
    %cst = arith.constant dense<0.000000e+00> : vector<72x512xf32>
    %4 = tpu.matmul %1, %3, %cst {dimension_numbers = #tpu.dot_dimension_numbers<[1], [0], [0], [1], [0, 0, 1, 1], [], []>} : vector<72x512xbf16>, vector<512x512xbf16>, vector<72x512xf32> -> vector<72x512xf32>
    %c0_5 = arith.constant 0 : index
    %c0_6 = arith.constant 0 : index
    %c0_7 = arith.constant 0 : index
    %5 = vector.load %arg3[%c0_5, %c0_6, %c0_7] : memref<1x1x512xf32, #tpu.memory_space<vmem>>, vector<1x1x512xf32>
    %6 = vector.shape_cast %5 : vector<1x1x512xf32> to vector<1x512xf32>
    %7 = vector.broadcast %6 : vector<1x512xf32> to vector<72x512xf32>
    %8 = arith.mulf %4, %7 : vector<72x512xf32>
    %c0_8 = arith.constant 0 : index
    %c0_9 = arith.constant 0 : index
    %c0_10 = arith.constant 0 : index
    %9 = vector.load %arg4[%c0_8, %c0_9, %c0_10] : memref<1x1x512xf32, #tpu.memory_space<vmem>>, vector<1x1x512xf32>
    %10 = vector.shape_cast %9 : vector<1x1x512xf32> to vector<1x512xf32>
    %11 = vector.broadcast %10 : vector<1x512xf32> to vector<72x512xf32>
    %12 = arith.addf %8, %11 : vector<72x512xf32>
    %cst_11 = arith.constant 0.000000e+00 : f32
    %13 = vector.broadcast %cst_11 : f32 to vector<72x512xf32>
    %14 = arith.maximumf %12, %13 : vector<72x512xf32>
    %c0_12 = arith.constant 0 : index
    %c0_13 = arith.constant 0 : index
    %c0_14 = arith.constant 0 : index
    %15 = vector.load %arg5[%c0_12, %c0_13, %c0_14] : memref<1x72x512xf32, #tpu.memory_space<vmem>>, vector<1x72x512xf32>
    %16 = vector.shape_cast %15 : vector<1x72x512xf32> to vector<72x512xf32>
    %17 = vector.shape_cast %14 : vector<72x512xf32> to vector<1x72x512xf32>
    tpu.vector_store %arg5[%c0_12, %c0_13, %c0_14], %17 {strides = array<i32>} : memref<1x72x512xf32, #tpu.memory_space<vmem>>, vector<1x72x512xf32>,
    return
  }
  func.func @transform_0(%arg0: i32) -> (i32, i32, i32) {
    %c0_i32 = arith.constant 0 : i32
    %c0_i32_0 = arith.constant 0 : i32
    %c0_i32_1 = arith.constant 0 : i32
    return %arg0, %c0_i32, %c0_i32_0 : i32, i32, i32
  }
  func.func @transform_1(%arg0: i32) -> (i32, i32, i32) {
    %c0_i32 = arith.constant 0 : i32
    %c0_i32_0 = arith.constant 0 : i32
    %c0_i32_1 = arith.constant 0 : i32
    return %arg0, %c0_i32, %c0_i32_0 : i32, i32, i32
  }
  func.func @transform_2(%arg0: i32) -> (i32, i32, i32) {
    %c0_i32 = arith.constant 0 : i32
    %c0_i32_0 = arith.constant 0 : i32
    %c0_i32_1 = arith.constant 0 : i32
    return %arg0, %c0_i32, %c0_i32_0 : i32, i32, i32
  }
  func.func @transform_3(%arg0: i32) -> (i32, i32, i32) {
    %c0_i32 = arith.constant 0 : i32
    %c0_i32_0 = arith.constant 0 : i32
    %c0_i32_1 = arith.constant 0 : i32
    return %arg0, %c0_i32, %c0_i32_0 : i32, i32, i32
  }
  func.func @transform_4(%arg0: i32) -> (i32, i32, i32) {
    %c0_i32 = arith.constant 0 : i32
    %c0_i32_0 = arith.constant 0 : i32
    %c0_i32_1 = arith.constant 0 : i32
    return %arg0, %c0_i32, %c0_i32_0 : i32, i32, i32
  }
}

</mosaic_0001>

<llo_original>
// kernel: tpu_custom_call.1
$region0: #{tpu_custom_call.1}
  #allocation0 [shape = 'u32[]', space=smem, size = 0x4, offset = 0x4, fixed_abs, tag = 'smem constant byte address 0x4 - core index']
  #allocation1 [shape = 'u32[144,128]{1,0:T(1,128)}', space=vmem, size = 0x12000, scoped, tag = 'internal scratch']
  %s0 = inlined_call_operand.hbm [shape: bf16[4,72,512], index: 0, kind: input, shape index: {}]
  %s1 = inlined_call_operand.hbm [shape: bf16[4,512,512], index: 1, kind: input, shape index: {}]
  %s2 = inlined_call_operand.hbm [shape: f32[4,1,512], index: 2, kind: input, shape index: {}]
  %s3 = inlined_call_operand.hbm [shape: f32[4,1,512], index: 3, kind: input, shape index: {}]
  %s4 = inlined_call_operand.hbm [shape: f32[4,72,512], index: 4, kind: output, shape index: {}]
  %s5 = sld [smem:[#allocation0]]
  $region65: #{tpu_custom_call.1} parent=0
    _
  %s7 = ssub.s32 1, %s5
  %s8 = scalar_select 0, %s7, %s5
  $region1: #{tpu_custom_call.1} parent=0
    #allocation2 [shape = 'u8[147456]{0}', space=vmem, size = 0x24000, scoped, tag = 'input window, operand 0']
    #allocation3 [shape = 's32[2]{0}', space=sflag, size = 0x8, scoped, tag = 'scoped memory for tpu_custom_call.1']
    #allocation4 [shape = 's32[2]{0}', space=sflag, size = 0x8, scoped, tag = 'scoped memory for tpu_custom_call.1']
    #allocation5 [shape = 'u8[1048576]{0}', space=vmem, size = 0x100000, scoped, tag = 'input window, operand 1']
    #allocation6 [shape = 's32[2]{0}', space=sflag, size = 0x8, scoped, tag = 'scoped memory for tpu_custom_call.1']
    #allocation7 [shape = 'u8[4096]{0}', space=vmem, size = 0x1000, scoped, tag = 'input window, operand 2']
    #allocation8 [shape = 'u8[4096]{0}', space=vmem, size = 0x1000, scoped, tag = 'input window, operand 3']
    #allocation9 [shape = 's32[2]{0}', space=sflag, size = 0x8, scoped, tag = 'scoped memory for tpu_custom_call.1']
    #allocation10 [shape = 'u8[294912]{0}', space=vmem, size = 0x48000, scoped, tag = 'output window, operand 0']
    %9 = vsyncpa [#allocation3], 0
    %s10 = scalar_lea.sflag [#allocation3], 1
    %11 = vsyncpa %s10, 0
    %12 = vsyncpa [#allocation6], 0
    %s13 = scalar_lea.sflag [#allocation6], 1
    %14 = vsyncpa %s13, 0
    %15 = vsyncpa [#allocation9], 0
    %s16 = scalar_lea.sflag [#allocation9], 1
    %17 = vsyncpa %s16, 0
    %18 = vsyncpa [#allocation4], 0
    %s19 = scalar_lea.sflag [#allocation4], 1
    %20 = vsyncpa %s19, 0
    loop: start=0, step=1, limit=6
    $region2: #{tpu_custom_call.1} parent=1 // loop_pre_header
      _
    $region3: #{tpu_custom_call.1} parent=1 // loop_header
      %s22 = sphi 0, %s26
      %p23 = scmp.ge.s32.totalorder %s22, 6
      %s32 = sphi 0, %s34
      %s35 = sphi 0, %s32
      %s36 = sphi 0, %s35
      %s52 = sphi 0, %s36
      %s58 = sphi 0, %s60
      %s61 = sphi 0, %s58
      %s62 = sphi 0, %s61
      %s78 = sphi 0, %s62
      %s84 = sphi 0, %s86
      %s87 = sphi 0, %s84
      %s88 = sphi 0, %s87
      %s104 = sphi 0, %s88
      %s110 = sphi 0, %s112
      %s113 = sphi 0, %s110
      %s114 = sphi 0, %s113
      %s130 = sphi 0, %s114
      %s136 = sphi 0, %s138
      %s139 = sphi 0, %s136
      %s140 = sphi 0, %s139
      %s156 = sphi 0, %s140
    $region4: #{tpu_custom_call.1} parent=1 // loop_header_branch
      %25 = sbr.rel (%p23) target = $region8
    $region5: #{tpu_custom_call.1} parent=1 // loop_body
      %s27 = ssub.s32 %s22, 1
      %s28 = ssub.s32 %s22, 2
      %s29 = sadd.s32 %s22, 1
      %s30 = ssub.s32 %s22, %s29
      %p31 = scmp.eq.s32.totalorder %s30, 0
      %s33 = sadd.s32 %s32, 1
      %s34 = scalar_select %p31, %s32, %s33
      %p37 = pneg %p31
      %p38 = scmp.eq.s32.totalorder %s22, 3
      %p39 = por %p37, %p38
      %p40 = scmp.ne.s32.totalorder %s32, %s35
      %p41 = scmp.eq.s32.totalorder %s22, 0
      %p42 = por %p40, %p41
      %p43 = scmp.ne.s32.totalorder %s32, %s35
      %p44 = scmp.eq.s32.totalorder %s27, 3
      %p45 = por %p43, %p44
      %p46 = scmp.ne.s32.totalorder %s35, %s36
      %p47 = scmp.eq.s32.totalorder %s27, 0
      %p48 = por %p46, %p47
      %p49 = scmp.ne.s32.totalorder %s35, %s36
      %p50 = scmp.eq.s32.totalorder %s28, 3
      %p51 = por %p49, %p50
      %p53 = scmp.ne.s32.totalorder %s36, %s52
      %p54 = scmp.eq.s32.totalorder %s28, 0
      %p55 = por %p53, %p54
      %s56 = ssub.s32 %s22, %s29
      %p57 = scmp.eq.s32.totalorder %s56, 0
      %s59 = sadd.s32 %s58, 1
      %s60 = scalar_select %p57, %s58, %s59
      %p63 = pneg %p57
      %p64 = scmp.eq.s32.totalorder %s22, 3
      %p65 = por %p63, %p64
      %p66 = scmp.ne.s32.totalorder %s58, %s61
      %p67 = scmp.eq.s32.totalorder %s22, 0
      %p68 = por %p66, %p67
      %p69 = scmp.ne.s32.totalorder %s58, %s61
      %p70 = scmp.eq.s32.totalorder %s27, 3
      %p71 = por %p69, %p70
      %p72 = scmp.ne.s32.totalorder %s61, %s62
      %p73 = scmp.eq.s32.totalorder %s27, 0
      %p74 = por %p72, %p73
      %p75 = scmp.ne.s32.totalorder %s61, %s62
      %p76 = scmp.eq.s32.totalorder %s28, 3
      %p77 = por %p75, %p76
      %p79 = scmp.ne.s32.totalorder %s62, %s78
      %p80 = scmp.eq.s32.totalorder %s28, 0
      %p81 = por %p79, %p80
      %s82 = ssub.s32 %s22, %s29
      %p83 = scmp.eq.s32.totalorder %s82, 0
      %s85 = sadd.s32 %s84, 1
      %s86 = scalar_select %p83, %s84, %s85
      %p89 = pneg %p83
      %p90 = scmp.eq.s32.totalorder %s22, 3
      %p91 = por %p89, %p90
      %p92 = scmp.ne.s32.totalorder %s84, %s87
      %p93 = scmp.eq.s32.totalorder %s22, 0
      %p94 = por %p92, %p93
      %p95 = scmp.ne.s32.totalorder %s84, %s87
      %p96 = scmp.eq.s32.totalorder %s27, 3
      %p97 = por %p95, %p96
      %p98 = scmp.ne.s32.totalorder %s87, %s88
      %p99 = scmp.eq.s32.totalorder %s27, 0
      %p100 = por %p98, %p99
      %p101 = scmp.ne.s32.totalorder %s87, %s88
      %p102 = scmp.eq.s32.totalorder %s28, 3
      %p103 = por %p101, %p102
      %p105 = scmp.ne.s32.totalorder %s88, %s104
      %p106 = scmp.eq.s32.totalorder %s28, 0
      %p107 = por %p105, %p106
      %s108 = ssub.s32 %s22, %s29
      %p109 = scmp.eq.s32.totalorder %s108, 0
      %s111 = sadd.s32 %s110, 1
      %s112 = scalar_select %p109, %s110, %s111
      %p115 = pneg %p109
      %p116 = scmp.eq.s32.totalorder %s22, 3
      %p117 = por %p115, %p116
      %p118 = scmp.ne.s32.totalorder %s110, %s113
      %p119 = scmp.eq.s32.totalorder %s22, 0
      %p120 = por %p118, %p119
      %p121 = scmp.ne.s32.totalorder %s110, %s113
      %p122 = scmp.eq.s32.totalorder %s27, 3
      %p123 = por %p121, %p122
      %p124 = scmp.ne.s32.totalorder %s113, %s114
      %p125 = scmp.eq.s32.totalorder %s27, 0
      %p126 = por %p124, %p125
      %p127 = scmp.ne.s32.totalorder %s113, %s114
      %p128 = scmp.eq.s32.totalorder %s28, 3
      %p129 = por %p127, %p128
      %p131 = scmp.ne.s32.totalorder %s114, %s130
      %p132 = scmp.eq.s32.totalorder %s28, 0
      %p133 = por %p131, %p132
      %s134 = ssub.s32 %s22, %s29
      %p135 = scmp.eq.s32.totalorder %s134, 0
      %s137 = sadd.s32 %s136, 1
      %s138 = scalar_select %p135, %s136, %s137
      %p141 = pneg %p135
      %p142 = scmp.eq.s32.totalorder %s22, 3
      %p143 = por %p141, %p142
      %p144 = scmp.ne.s32.totalorder %s136, %s139
      %p145 = scmp.eq.s32.totalorder %s22, 0
      %p146 = por %p144, %p145
      %p147 = scmp.ne.s32.totalorder %s136, %s139
      %p148 = scmp.eq.s32.totalorder %s27, 3
      %p149 = por %p147, %p148
      %p150 = scmp.ne.s32.totalorder %s139, %s140
      %p151 = scmp.eq.s32.totalorder %s27, 0
      %p152 = por %p150, %p151
      %p153 = scmp.ne.s32.totalorder %s139, %s140
      %p154 = scmp.eq.s32.totalorder %s28, 3
      %p155 = por %p153, %p154
      %p157 = scmp.ne.s32.totalorder %s140, %s156
      %p158 = scmp.eq.s32.totalorder %s28, 0
      %p159 = por %p157, %p158
      %p160 = scmp.le.s32.totalorder 1, %s22
      %p161 = scmp.lt.s32.totalorder %s22, 5
      %p162 = pnand %p160, %p161
      %p163 = pneg %p162
      // Predicated region
      $region9: #{tpu_custom_call.1} parent=5 // pred_check
        _
      $region10: #{tpu_custom_call.1} parent=5 // pred_check_branch
        %165 = sbr.rel (%p162) target = $region12
      $region11: #{tpu_custom_call.1} parent=5 // pred_region
        %s166 = ssub.s32 %s22, 1
      $region12: #{tpu_custom_call.1} parent=5 // pred_fallthru
        _
      %p167 = scmp.lt.s32.totalorder %s22, 4
      // Predicated region
      $region13: #{tpu_custom_call.1} parent=5 // pred_check
        %p168 = pneg %p167
      $region14: #{tpu_custom_call.1} parent=5 // pred_check_branch
        %170 = sbr.rel (%p168) target = $region16
      $region15: #{tpu_custom_call.1} parent=5 // pred_region
        // Predicated region
        $region17: #{tpu_custom_call.1} parent=15 // pred_check
          %p171 = pneg %p42
        $region18: #{tpu_custom_call.1} parent=15 // pred_check_branch
          %173 = sbr.rel (%p171) target = $region20
        $region19: #{tpu_custom_call.1} parent=15 // pred_region
          %s174 = sand.u32 %s32, 1
          %s175 = scalar_lea.sflag [#allocation3], %s174
          %s176 = sand.u32 %s32, 1
          %s177 = smul.addr %s176, 144
          %s178 = scalar_lea.vmem [#allocation2], %s177
          %s180 = ssub.s32 2304, 2304
          %181 = vsyncadd %s175, %s180
          %s182 = smul.addr %s22, 36
          %s183 = smul.addr %s182, 64
          %s184 = scalar_lea.hbm %s0, %s183
          %s185 = sshll.u32 %s178, 4
          %s186 = int_to_ptr.vmem [resolvable:$true] %s185
          %191 = dma.hbm_to_vmem [thread:$0]  %s184, 2304, %s186, %s175, 256, 256, 16
        $region20: #{tpu_custom_call.1} parent=15 // pred_fallthru
          _
        // Predicated region
        $region21: #{tpu_custom_call.1} parent=15 // pred_check
          %p192 = pneg %p68
        $region22: #{tpu_custom_call.1} parent=15 // pred_check_branch
          %194 = sbr.rel (%p192) target = $region24
        $region23: #{tpu_custom_call.1} parent=15 // pred_region
          %s195 = sand.u32 %s22, 1
          %s196 = scalar_lea.sflag [#allocation6], %s195
          %s197 = sand.u32 %s58, 1
          %s198 = smul.addr %s197, 1024
          %s199 = scalar_lea.vmem [#allocation5], %s198
          %s201 = ssub.s32 16384, 16384
          %202 = vsyncadd %s196, %s201
          %s203 = smul.addr %s22, 256
          %s204 = smul.addr %s203, 64
          %s205 = scalar_lea.hbm %s1, %s204
          %s206 = sshll.u32 %s199, 4
          %s207 = int_to_ptr.vmem [resolvable:$true] %s206
          %212 = dma.hbm_to_vmem [thread:$0]  %s205, 16384, %s207, %s196, 256, 256, 16
        $region24: #{tpu_custom_call.1} parent=15 // pred_fallthru
          _
        // Predicated region
        $region25: #{tpu_custom_call.1} parent=15 // pred_check
          %p213 = pneg %p94
        $region26: #{tpu_custom_call.1} parent=15 // pred_check_branch
          %215 = sbr.rel (%p213) target = $region28
        $region27: #{tpu_custom_call.1} parent=15 // pred_region
          %s216 = sand.u32 %s22, 1
          %s217 = scalar_lea.sflag [#allocation6], %s216
          %s218 = sand.u32 %s84, 1
          %s219 = smul.addr %s218, 4
          %s220 = scalar_lea.vmem [#allocation7], %s219
          %s222 = ssub.s32 64, 64
          %223 = vsyncadd %s217, %s222
          %s224 = smul.addr %s22, 4
          %s225 = smul.addr %s224, 16
          %s226 = scalar_lea.hbm %s2, %s225
          %s228 = sshll.u32 %s220, 4
          %s229 = int_to_ptr.vmem [resolvable:$true] %s228
          %231 = dma.hbm_to_vmem [thread:$0]  %s226, 64, %s229, %s217
        $region28: #{tpu_custom_call.1} parent=15 // pred_fallthru
          _
        // Predicated region
        $region29: #{tpu_custom_call.1} parent=15 // pred_check
          %p232 = pneg %p120
        $region30: #{tpu_custom_call.1} parent=15 // pred_check_branch
          %234 = sbr.rel (%p232) target = $region32
        $region31: #{tpu_custom_call.1} parent=15 // pred_region
          %s235 = sand.u32 %s110, 1
          %s236 = scalar_lea.sflag [#allocation9], %s235
          %s237 = sand.u32 %s110, 1
          %s238 = smul.addr %s237, 4
          %s239 = scalar_lea.vmem [#allocation8], %s238
          %s241 = ssub.s32 64, 64
          %242 = vsyncadd %s236, %s241
          %s243 = smul.addr %s22, 4
          %s244 = smul.addr %s243, 16
          %s245 = scalar_lea.hbm %s3, %s244
          %s247 = sshll.u32 %s239, 4
          %s248 = int_to_ptr.vmem [resolvable:$true] %s247
          %250 = dma.hbm_to_vmem [thread:$0]  %s245, 64, %s248, %s236
        $region32: #{tpu_custom_call.1} parent=15 // pred_fallthru
          _
      $region16: #{tpu_custom_call.1} parent=5 // pred_fallthru
        _
      %p251 = scmp.le.s32.totalorder 1, %s22
      %p252 = scmp.lt.s32.totalorder %s22, 5
      %p253 = pnand %p251, %p252
      %p254 = pneg %p253
      // Predicated region
      $region33: #{tpu_custom_call.1} parent=5 // pred_check
        _
      $region34: #{tpu_custom_call.1} parent=5 // pred_check_branch
        %256 = sbr.rel (%p253) target = $region36
      $region35: #{tpu_custom_call.1} parent=5 // pred_region
        %s257 = ssub.s32 %s22, 1
        %s258 = sand.u32 %s35, 1
        %s259 = scalar_lea.sflag [#allocation3], %s258
        %s260 = sand.u32 %s35, 1
        %s261 = smul.addr %s260, 144
        %s262 = scalar_lea.vmem [#allocation2], %s261
        // Predicated region
        $region37: #{tpu_custom_call.1} parent=35 // pred_check
          %p263 = pneg %p48
        $region38: #{tpu_custom_call.1} parent=35 // pred_check_branch
          %265 = sbr.rel (%p263) target = $region40
        $region39: #{tpu_custom_call.1} parent=35 // pred_region
          %266 = dma.done %s259, 2304
        $region40: #{tpu_custom_call.1} parent=35 // pred_fallthru
          _
        %s267 = sand.u32 %s27, 1
        %s268 = scalar_lea.sflag [#allocation6], %s267
        %s269 = sand.u32 %s61, 1
        %s270 = smul.addr %s269, 1024
        %s271 = scalar_lea.vmem [#allocation5], %s270
        // Predicated region
        $region41: #{tpu_custom_call.1} parent=35 // pred_check
          %p272 = pneg %p74
        $region42: #{tpu_custom_call.1} parent=35 // pred_check_branch
          %274 = sbr.rel (%p272) target = $region44
        $region43: #{tpu_custom_call.1} parent=35 // pred_region
          %275 = dma.done %s268, 16384
        $region44: #{tpu_custom_call.1} parent=35 // pred_fallthru
          _
        %s276 = sand.u32 %s27, 1
        %s277 = scalar_lea.sflag [#allocation6], %s276
        %s278 = sand.u32 %s87, 1
        %s279 = smul.addr %s278, 4
        %s280 = scalar_lea.vmem [#allocation7], %s279
        // Predicated region
        $region45: #{tpu_custom_call.1} parent=35 // pred_check
          %p281 = pneg %p100
        $region46: #{tpu_custom_call.1} parent=35 // pred_check_branch
          %283 = sbr.rel (%p281) target = $region48
        $region47: #{tpu_custom_call.1} parent=35 // pred_region
          %284 = dma.done %s277, 64
        $region48: #{tpu_custom_call.1} parent=35 // pred_fallthru
          _
        %s285 = sand.u32 %s113, 1
        %s286 = scalar_lea.sflag [#allocation9], %s285
        %s287 = sand.u32 %s113, 1
        %s288 = smul.addr %s287, 4
        %s289 = scalar_lea.vmem [#allocation8], %s288
        // Predicated region
        $region49: #{tpu_custom_call.1} parent=35 // pred_check
          %p290 = pneg %p126
        $region50: #{tpu_custom_call.1} parent=35 // pred_check_branch
          %292 = sbr.rel (%p290) target = $region52
        $region51: #{tpu_custom_call.1} parent=35 // pred_region
          %293 = dma.done %s286, 64
        $region52: #{tpu_custom_call.1} parent=35 // pred_fallthru
          _
        %s294 = sand.u32 %s35, 1
        %s295 = scalar_lea.sflag [#allocation3], %s294
        %s296 = sand.u32 %s35, 1
        %s297 = smul.addr %s296, 144
        %s298 = scalar_lea.vmem [#allocation2], %s297
        %p299 = pneg %p48
        %p300 = pneg %p45
        %s301 = sand.u32 %s27, 1
        %s302 = scalar_lea.sflag [#allocation6], %s301
        %s303 = sand.u32 %s61, 1
        %s304 = smul.addr %s303, 1024
        %s305 = scalar_lea.vmem [#allocation5], %s304
        %p306 = pneg %p74
        %p307 = pneg %p71
        %s308 = sand.u32 %s27, 1
        %s309 = scalar_lea.sflag [#allocation6], %s308
        %s310 = sand.u32 %s87, 1
        %s311 = smul.addr %s310, 4
        %s312 = scalar_lea.vmem [#allocation7], %s311
        %p313 = pneg %p100
        %p314 = pneg %p97
        %s315 = sand.u32 %s113, 1
        %s316 = scalar_lea.sflag [#allocation9], %s315
        %s317 = sand.u32 %s113, 1
        %s318 = smul.addr %s317, 4
        %s319 = scalar_lea.vmem [#allocation8], %s318
        %p320 = pneg %p126
        %p321 = pneg %p123
        %p322 = pneg %p152
        %p323 = pneg %p149
        %s324 = sand.u32 %s139, 1
        %s325 = scalar_lea.sflag [#allocation4], %s324
        %s326 = sand.u32 %s139, 1
        %s327 = smul.addr %s326, 288
        %s328 = scalar_lea.vmem [#allocation10], %s327
        %v329 = vld [vmem:[%s262] sm:$0xff]
        %v330 = vld [vmem:[%s262 + $0x8] sm:$0xff]
        %v331 = vld [vmem:[%s262 + $0x10] sm:$0xff]
        %v332 = vld [vmem:[%s262 + $0x18] sm:$0xff]
        %v333 = vld [vmem:[%s262 + $0x20] sm:$0xff]
        %v334 = vld [vmem:[%s262 + $0x28] sm:$0xff]
        %v335 = vld [vmem:[%s262 + $0x30] sm:$0xff]
        %v336 = vld [vmem:[%s262 + $0x38] sm:$0xff]
        %v337 = vld [vmem:[%s262 + $0x40] sm:$0xff]
        %v338 = vld [vmem:[%s262 + $0x48] sm:$0xff]
        %v339 = vld [vmem:[%s262 + $0x50] sm:$0xff]
        %v340 = vld [vmem:[%s262 + $0x58] sm:$0xff]
        %v341 = vld [vmem:[%s262 + $0x60] sm:$0xff]
        %v342 = vld [vmem:[%s262 + $0x68] sm:$0xff]
        %v343 = vld [vmem:[%s262 + $0x70] sm:$0xff]
        %v344 = vld [vmem:[%s262 + $0x78] sm:$0xff]
        %v345 = vld [vmem:[%s262 + $0x80] sm:$0xff]
        %v346 = vld [vmem:[%s262 + $0x88] sm:$0xff]
        %v347 = vld [vmem:[%s271] sm:$0xff]
        %v348 = vld [vmem:[%s271 + $0x8] sm:$0xff]
        %v349 = vld [vmem:[%s271 + $0x10] sm:$0xff]
        %v350 = vld [vmem:[%s271 + $0x18] sm:$0xff]
        %v351 = vld [vmem:[%s271 + $0x20] sm:$0xff]
        %v352 = vld [vmem:[%s271 + $0x28] sm:$0xff]
        %v353 = vld [vmem:[%s271 + $0x30] sm:$0xff]
        %v354 = vld [vmem:[%s271 + $0x38] sm:$0xff]
        %v355 = vld [vmem:[%s271 + $0x40] sm:$0xff]
        %v356 = vld [vmem:[%s271 + $0x48] sm:$0xff]
        %v357 = vld [vmem:[%s271 + $0x50] sm:$0xff]
        %v358 = vld [vmem:[%s271 + $0x58] sm:$0xff]
        %v359 = vld [vmem:[%s271 + $0x60] sm:$0xff]
        %v360 = vld [vmem:[%s271 + $0x68] sm:$0xff]
        %v361 = vld [vmem:[%s271 + $0x70] sm:$0xff]
        %v362 = vld [vmem:[%s271 + $0x78] sm:$0xff]
        %v363 = vld [vmem:[%s271 + $0x80] sm:$0xff]
        %v364 = vld [vmem:[%s271 + $0x88] sm:$0xff]
        %v365 = vld [vmem:[%s271 + $0x90] sm:$0xff]
        %v366 = vld [vmem:[%s271 + $0x98] sm:$0xff]
        %v367 = vld [vmem:[%s271 + $0xa0] sm:$0xff]
        %v368 = vld [vmem:[%s271 + $0xa8] sm:$0xff]
        %v369 = vld [vmem:[%s271 + $0xb0] sm:$0xff]
        %v370 = vld [vmem:[%s271 + $0xb8] sm:$0xff]
        %v371 = vld [vmem:[%s271 + $0xc0] sm:$0xff]
        %v372 = vld [vmem:[%s271 + $0xc8] sm:$0xff]
        %v373 = vld [vmem:[%s271 + $0xd0] sm:$0xff]
        %v374 = vld [vmem:[%s271 + $0xd8] sm:$0xff]
        %v375 = vld [vmem:[%s271 + $0xe0] sm:$0xff]
        %v376 = vld [vmem:[%s271 + $0xe8] sm:$0xff]
        %v377 = vld [vmem:[%s271 + $0xf0] sm:$0xff]
        %v378 = vld [vmem:[%s271 + $0xf8] sm:$0xff]
        %v379 = vld [vmem:[%s271 + $0x100] sm:$0xff]
        %v380 = vld [vmem:[%s271 + $0x108] sm:$0xff]
        %v381 = vld [vmem:[%s271 + $0x110] sm:$0xff]
        %v382 = vld [vmem:[%s271 + $0x118] sm:$0xff]
        %v383 = vld [vmem:[%s271 + $0x120] sm:$0xff]
        %v384 = vld [vmem:[%s271 + $0x128] sm:$0xff]
        %v385 = vld [vmem:[%s271 + $0x130] sm:$0xff]
        %v386 = vld [vmem:[%s271 + $0x138] sm:$0xff]
        %v387 = vld [vmem:[%s271 + $0x140] sm:$0xff]
        %v388 = vld [vmem:[%s271 + $0x148] sm:$0xff]
        %v389 = vld [vmem:[%s271 + $0x150] sm:$0xff]
        %v390 = vld [vmem:[%s271 + $0x158] sm:$0xff]
        %v391 = vld [vmem:[%s271 + $0x160] sm:$0xff]
        %v392 = vld [vmem:[%s271 + $0x168] sm:$0xff]
        %v393 = vld [vmem:[%s271 + $0x170] sm:$0xff]
        %v394 = vld [vmem:[%s271 + $0x178] sm:$0xff]
        %v395 = vld [vmem:[%s271 + $0x180] sm:$0xff]
        %v396 = vld [vmem:[%s271 + $0x188] sm:$0xff]
        %v397 = vld [vmem:[%s271 + $0x190] sm:$0xff]
        %v398 = vld [vmem:[%s271 + $0x198] sm:$0xff]
        %v399 = vld [vmem:[%s271 + $0x1a0] sm:$0xff]
        %v400 = vld [vmem:[%s271 + $0x1a8] sm:$0xff]
        %v401 = vld [vmem:[%s271 + $0x1b0] sm:$0xff]
        %v402 = vld [vmem:[%s271 + $0x1b8] sm:$0xff]
        %v403 = vld [vmem:[%s271 + $0x1c0] sm:$0xff]
        %v404 = vld [vmem:[%s271 + $0x1c8] sm:$0xff]
        %v405 = vld [vmem:[%s271 + $0x1d0] sm:$0xff]
        %v406 = vld [vmem:[%s271 + $0x1d8] sm:$0xff]
        %v407 = vld [vmem:[%s271 + $0x1e0] sm:$0xff]
        %v408 = vld [vmem:[%s271 + $0x1e8] sm:$0xff]
        %v409 = vld [vmem:[%s271 + $0x1f0] sm:$0xff]
        %v410 = vld [vmem:[%s271 + $0x1f8] sm:$0xff]
        %v411 = vld [vmem:[%s271 + $0x200] sm:$0xff]
        %v412 = vld [vmem:[%s271 + $0x208] sm:$0xff]
        %v413 = vld [vmem:[%s271 + $0x210] sm:$0xff]
        %v414 = vld [vmem:[%s271 + $0x218] sm:$0xff]
        %v415 = vld [vmem:[%s271 + $0x220] sm:$0xff]
        %v416 = vld [vmem:[%s271 + $0x228] sm:$0xff]
        %v417 = vld [vmem:[%s271 + $0x230] sm:$0xff]
        %v418 = vld [vmem:[%s271 + $0x238] sm:$0xff]
        %v419 = vld [vmem:[%s271 + $0x240] sm:$0xff]
        %v420 = vld [vmem:[%s271 + $0x248] sm:$0xff]
        %v421 = vld [vmem:[%s271 + $0x250] sm:$0xff]
        %v422 = vld [vmem:[%s271 + $0x258] sm:$0xff]
        %v423 = vld [vmem:[%s271 + $0x260] sm:$0xff]
        %v424 = vld [vmem:[%s271 + $0x268] sm:$0xff]
        %v425 = vld [vmem:[%s271 + $0x270] sm:$0xff]
        %v426 = vld [vmem:[%s271 + $0x278] sm:$0xff]
        %v427 = vld [vmem:[%s271 + $0x280] sm:$0xff]
        %v428 = vld [vmem:[%s271 + $0x288] sm:$0xff]
        %v429 = vld [vmem:[%s271 + $0x290] sm:$0xff]
        %v430 = vld [vmem:[%s271 + $0x298] sm:$0xff]
        %v431 = vld [vmem:[%s271 + $0x2a0] sm:$0xff]
        %v432 = vld [vmem:[%s271 + $0x2a8] sm:$0xff]
        %v433 = vld [vmem:[%s271 + $0x2b0] sm:$0xff]
        %v434 = vld [vmem:[%s271 + $0x2b8] sm:$0xff]
        %v435 = vld [vmem:[%s271 + $0x2c0] sm:$0xff]
        %v436 = vld [vmem:[%s271 + $0x2c8] sm:$0xff]
        %v437 = vld [vmem:[%s271 + $0x2d0] sm:$0xff]
        %v438 = vld [vmem:[%s271 + $0x2d8] sm:$0xff]
        %v439 = vld [vmem:[%s271 + $0x2e0] sm:$0xff]
        %v440 = vld [vmem:[%s271 + $0x2e8] sm:$0xff]
        %v441 = vld [vmem:[%s271 + $0x2f0] sm:$0xff]
        %v442 = vld [vmem:[%s271 + $0x2f8] sm:$0xff]
        %v443 = vld [vmem:[%s271 + $0x300] sm:$0xff]
        %v444 = vld [vmem:[%s271 + $0x308] sm:$0xff]
        %v445 = vld [vmem:[%s271 + $0x310] sm:$0xff]
        %v446 = vld [vmem:[%s271 + $0x318] sm:$0xff]
        %v447 = vld [vmem:[%s271 + $0x320] sm:$0xff]
        %v448 = vld [vmem:[%s271 + $0x328] sm:$0xff]
        %v449 = vld [vmem:[%s271 + $0x330] sm:$0xff]
        %v450 = vld [vmem:[%s271 + $0x338] sm:$0xff]
        %v451 = vld [vmem:[%s271 + $0x340] sm:$0xff]
        %v452 = vld [vmem:[%s271 + $0x348] sm:$0xff]
        %v453 = vld [vmem:[%s271 + $0x350] sm:$0xff]
        %v454 = vld [vmem:[%s271 + $0x358] sm:$0xff]
        %v455 = vld [vmem:[%s271 + $0x360] sm:$0xff]
        %v456 = vld [vmem:[%s271 + $0x368] sm:$0xff]
        %v457 = vld [vmem:[%s271 + $0x370] sm:$0xff]
        %v458 = vld [vmem:[%s271 + $0x378] sm:$0xff]
        %v459 = vld [vmem:[%s271 + $0x380] sm:$0xff]
        %v460 = vld [vmem:[%s271 + $0x388] sm:$0xff]
        %v461 = vld [vmem:[%s271 + $0x390] sm:$0xff]
        %v462 = vld [vmem:[%s271 + $0x398] sm:$0xff]
        %v463 = vld [vmem:[%s271 + $0x3a0] sm:$0xff]
        %v464 = vld [vmem:[%s271 + $0x3a8] sm:$0xff]
        %v465 = vld [vmem:[%s271 + $0x3b0] sm:$0xff]
        %v466 = vld [vmem:[%s271 + $0x3b8] sm:$0xff]
        %v467 = vld [vmem:[%s271 + $0x3c0] sm:$0xff]
        %v468 = vld [vmem:[%s271 + $0x3c8] sm:$0xff]
        %v469 = vld [vmem:[%s271 + $0x3d0] sm:$0xff]
        %v470 = vld [vmem:[%s271 + $0x3d8] sm:$0xff]
        %v471 = vld [vmem:[%s271 + $0x3e0] sm:$0xff]
        %v472 = vld [vmem:[%s271 + $0x3e8] sm:$0xff]
        %v473 = vld [vmem:[%s271 + $0x3f0] sm:$0xff]
        %v474 = vld [vmem:[%s271 + $0x3f8] sm:$0xff]
        %v493 = vunpack.c.l.b16 %v329
        %v494 = vunpack.c.h.b16 %v329
        %v495 = vunpack.c.l.b16 %v330
        %v496 = vunpack.c.h.b16 %v330
        %v497 = vunpack.c.l.b16 %v331
        %v498 = vunpack.c.h.b16 %v331
        %v499 = vunpack.c.l.b16 %v332
        %v500 = vunpack.c.h.b16 %v332
        %v501 = vunpack.c.l.b16 %v333
        %v502 = vunpack.c.h.b16 %v333
        %v503 = vunpack.c.l.b16 %v334
        %v504 = vunpack.c.h.b16 %v334
        %v505 = vunpack.c.l.b16 %v335
        %v506 = vunpack.c.h.b16 %v335
        %v507 = vunpack.c.l.b16 %v336
        %v508 = vunpack.c.h.b16 %v336
        %v509 = vunpack.c.l.b16 %v337
        %v510 = vunpack.c.h.b16 %v337
        %v511 = vunpack.c.l.b16 %v338
        %v512 = vunpack.c.h.b16 %v338
        %v513 = vunpack.c.l.b16 %v339
        %v514 = vunpack.c.h.b16 %v339
        %v515 = vunpack.c.l.b16 %v340
        %v516 = vunpack.c.h.b16 %v340
        %v517 = vunpack.c.l.b16 %v341
        %v518 = vunpack.c.h.b16 %v341
        %v519 = vunpack.c.l.b16 %v342
        %v520 = vunpack.c.h.b16 %v342
        %v521 = vunpack.c.l.b16 %v343
        %v522 = vunpack.c.h.b16 %v343
        %v523 = vunpack.c.l.b16 %v344
        %v524 = vunpack.c.h.b16 %v344
        %v525 = vunpack.c.l.b16 %v345
        %v526 = vunpack.c.h.b16 %v345
        %v527 = vunpack.c.l.b16 %v346
        %v528 = vunpack.c.h.b16 %v346
        %v529 = vpack.c.b16 %v497, %v493
        %v530 = vpack.c.b16 %v498, %v494
        %v531 = vpack.c.b16 %v499, %v495
        %v532 = vpack.c.b16 %v500, %v496
        %v533 = vpack.c.b16 %v505, %v501
        %v534 = vpack.c.b16 %v506, %v502
        %v535 = vpack.c.b16 %v507, %v503
        %v536 = vpack.c.b16 %v508, %v504
        %v537 = vpack.c.b16 %v513, %v509
        %v538 = vpack.c.b16 %v514, %v510
        %v539 = vpack.c.b16 %v515, %v511
        %v540 = vpack.c.b16 %v516, %v512
        %v541 = vpack.c.b16 %v521, %v517
        %v542 = vpack.c.b16 %v522, %v518
        %v543 = vpack.c.b16 %v523, %v519
        %v544 = vpack.c.b16 %v524, %v520
        %v545 = vpack.c.b16 %v525, %v525
        %v546 = vpack.c.b16 %v526, %v526
        %v547 = vpack.c.b16 %v527, %v527
        %v548 = vpack.c.b16 %v528, %v528
        %v697 = vunpack.c.l.b16 %v347
        %v698 = vunpack.c.h.b16 %v347
        %v699 = vunpack.c.l.b16 %v348
        %v700 = vunpack.c.h.b16 %v348
        %v701 = vunpack.c.l.b16 %v349
        %v702 = vunpack.c.h.b16 %v349
        %v703 = vunpack.c.l.b16 %v350
        %v704 = vunpack.c.h.b16 %v350
        %v705 = vunpack.c.l.b16 %v351
        %v706 = vunpack.c.h.b16 %v351
        %v707 = vunpack.c.l.b16 %v352
        %v708 = vunpack.c.h.b16 %v352
        %v709 = vunpack.c.l.b16 %v353
        %v710 = vunpack.c.h.b16 %v353
        %v711 = vunpack.c.l.b16 %v354
        %v712 = vunpack.c.h.b16 %v354
        %v713 = vunpack.c.l.b16 %v355
        %v714 = vunpack.c.h.b16 %v355
        %v715 = vunpack.c.l.b16 %v356
        %v716 = vunpack.c.h.b16 %v356
        %v717 = vunpack.c.l.b16 %v357
        %v718 = vunpack.c.h.b16 %v357
        %v719 = vunpack.c.l.b16 %v358
        %v720 = vunpack.c.h.b16 %v358
        %v721 = vunpack.c.l.b16 %v359
        %v722 = vunpack.c.h.b16 %v359
        %v723 = vunpack.c.l.b16 %v360
        %v724 = vunpack.c.h.b16 %v360
        %v725 = vunpack.c.l.b16 %v361
        %v726 = vunpack.c.h.b16 %v361
        %v727 = vunpack.c.l.b16 %v362
        %v728 = vunpack.c.h.b16 %v362
        %v729 = vunpack.c.l.b16 %v363
        %v730 = vunpack.c.h.b16 %v363
        %v731 = vunpack.c.l.b16 %v364
        %v732 = vunpack.c.h.b16 %v364
        %v733 = vunpack.c.l.b16 %v365
        %v734 = vunpack.c.h.b16 %v365
        %v735 = vunpack.c.l.b16 %v366
        %v736 = vunpack.c.h.b16 %v366
        %v737 = vunpack.c.l.b16 %v367
        %v738 = vunpack.c.h.b16 %v367
        %v739 = vunpack.c.l.b16 %v368
        %v740 = vunpack.c.h.b16 %v368
        %v741 = vunpack.c.l.b16 %v369
        %v742 = vunpack.c.h.b16 %v369
        %v743 = vunpack.c.l.b16 %v370
        %v744 = vunpack.c.h.b16 %v370
        %v745 = vunpack.c.l.b16 %v371
        %v746 = vunpack.c.h.b16 %v371
        %v747 = vunpack.c.l.b16 %v372
        %v748 = vunpack.c.h.b16 %v372
        %v749 = vunpack.c.l.b16 %v373
        %v750 = vunpack.c.h.b16 %v373
        %v751 = vunpack.c.l.b16 %v374
        %v752 = vunpack.c.h.b16 %v374
        %v753 = vunpack.c.l.b16 %v375
        %v754 = vunpack.c.h.b16 %v375
        %v755 = vunpack.c.l.b16 %v376
        %v756 = vunpack.c.h.b16 %v376
        %v757 = vunpack.c.l.b16 %v377
        %v758 = vunpack.c.h.b16 %v377
        %v759 = vunpack.c.l.b16 %v378
        %v760 = vunpack.c.h.b16 %v378
        %v761 = vunpack.c.l.b16 %v379
        %v762 = vunpack.c.h.b16 %v379
        %v763 = vunpack.c.l.b16 %v380
        %v764 = vunpack.c.h.b16 %v380
        %v765 = vunpack.c.l.b16 %v381
        %v766 = vunpack.c.h.b16 %v381
        %v767 = vunpack.c.l.b16 %v382
        %v768 = vunpack.c.h.b16 %v382
        %v769 = vunpack.c.l.b16 %v383
        %v770 = vunpack.c.h.b16 %v383
        %v771 = vunpack.c.l.b16 %v384
        %v772 = vunpack.c.h.b16 %v384
        %v773 = vunpack.c.l.b16 %v385
        %v774 = vunpack.c.h.b16 %v385
        %v775 = vunpack.c.l.b16 %v386
        %v776 = vunpack.c.h.b16 %v386
        %v777 = vunpack.c.l.b16 %v387
        %v778 = vunpack.c.h.b16 %v387
        %v779 = vunpack.c.l.b16 %v388
        %v780 = vunpack.c.h.b16 %v388
        %v781 = vunpack.c.l.b16 %v389
        %v782 = vunpack.c.h.b16 %v389
        %v783 = vunpack.c.l.b16 %v390
        %v784 = vunpack.c.h.b16 %v390
        %v785 = vunpack.c.l.b16 %v391
        %v786 = vunpack.c.h.b16 %v391
        %v787 = vunpack.c.l.b16 %v392
        %v788 = vunpack.c.h.b16 %v392
        %v789 = vunpack.c.l.b16 %v393
        %v790 = vunpack.c.h.b16 %v393
        %v791 = vunpack.c.l.b16 %v394
        %v792 = vunpack.c.h.b16 %v394
        %v793 = vunpack.c.l.b16 %v395
        %v794 = vunpack.c.h.b16 %v395
        %v795 = vunpack.c.l.b16 %v396
        %v796 = vunpack.c.h.b16 %v396
        %v797 = vunpack.c.l.b16 %v397
        %v798 = vunpack.c.h.b16 %v397
        %v799 = vunpack.c.l.b16 %v398
        %v800 = vunpack.c.h.b16 %v398
        %v801 = vunpack.c.l.b16 %v399
        %v802 = vunpack.c.h.b16 %v399
        %v803 = vunpack.c.l.b16 %v400
        %v804 = vunpack.c.h.b16 %v400
        %v805 = vunpack.c.l.b16 %v401
        %v806 = vunpack.c.h.b16 %v401
        %v807 = vunpack.c.l.b16 %v402
        %v808 = vunpack.c.h.b16 %v402
        %v809 = vunpack.c.l.b16 %v403
        %v810 = vunpack.c.h.b16 %v403
        %v811 = vunpack.c.l.b16 %v404
        %v812 = vunpack.c.h.b16 %v404
        %v813 = vunpack.c.l.b16 %v405
        %v814 = vunpack.c.h.b16 %v405
        %v815 = vunpack.c.l.b16 %v406
        %v816 = vunpack.c.h.b16 %v406
        %v817 = vunpack.c.l.b16 %v407
        %v818 = vunpack.c.h.b16 %v407
        %v819 = vunpack.c.l.b16 %v408
        %v820 = vunpack.c.h.b16 %v408
        %v821 = vunpack.c.l.b16 %v409
        %v822 = vunpack.c.h.b16 %v409
        %v823 = vunpack.c.l.b16 %v410
        %v824 = vunpack.c.h.b16 %v410
        %v825 = vunpack.c.l.b16 %v411
        %v826 = vunpack.c.h.b16 %v411
        %v827 = vunpack.c.l.b16 %v412
        %v828 = vunpack.c.h.b16 %v412
        %v829 = vunpack.c.l.b16 %v413
        %v830 = vunpack.c.h.b16 %v413
        %v831 = vunpack.c.l.b16 %v414
        %v832 = vunpack.c.h.b16 %v414
        %v833 = vunpack.c.l.b16 %v415
        %v834 = vunpack.c.h.b16 %v415
        %v835 = vunpack.c.l.b16 %v416
        %v836 = vunpack.c.h.b16 %v416
        %v837 = vunpack.c.l.b16 %v417
        %v838 = vunpack.c.h.b16 %v417
        %v839 = vunpack.c.l.b16 %v418
        %v840 = vunpack.c.h.b16 %v418
        %v841 = vunpack.c.l.b16 %v419
        %v842 = vunpack.c.h.b16 %v419
        %v843 = vunpack.c.l.b16 %v420
        %v844 = vunpack.c.h.b16 %v420
        %v845 = vunpack.c.l.b16 %v421
        %v846 = vunpack.c.h.b16 %v421
        %v847 = vunpack.c.l.b16 %v422
        %v848 = vunpack.c.h.b16 %v422
        %v849 = vunpack.c.l.b16 %v423
        %v850 = vunpack.c.h.b16 %v423
        %v851 = vunpack.c.l.b16 %v424
        %v852 = vunpack.c.h.b16 %v424
        %v853 = vunpack.c.l.b16 %v425
        %v854 = vunpack.c.h.b16 %v425
        %v855 = vunpack.c.l.b16 %v426
        %v856 = vunpack.c.h.b16 %v426
        %v857 = vunpack.c.l.b16 %v427
        %v858 = vunpack.c.h.b16 %v427
        %v859 = vunpack.c.l.b16 %v428
        %v860 = vunpack.c.h.b16 %v428
        %v861 = vunpack.c.l.b16 %v429
        %v862 = vunpack.c.h.b16 %v429
        %v863 = vunpack.c.l.b16 %v430
        %v864 = vunpack.c.h.b16 %v430
        %v865 = vunpack.c.l.b16 %v431
        %v866 = vunpack.c.h.b16 %v431
        %v867 = vunpack.c.l.b16 %v432
        %v868 = vunpack.c.h.b16 %v432
        %v869 = vunpack.c.l.b16 %v433
        %v870 = vunpack.c.h.b16 %v433
        %v871 = vunpack.c.l.b16 %v434
        %v872 = vunpack.c.h.b16 %v434
        %v873 = vunpack.c.l.b16 %v435
        %v874 = vunpack.c.h.b16 %v435
        %v875 = vunpack.c.l.b16 %v436
        %v876 = vunpack.c.h.b16 %v436
        %v877 = vunpack.c.l.b16 %v437
        %v878 = vunpack.c.h.b16 %v437
        %v879 = vunpack.c.l.b16 %v438
        %v880 = vunpack.c.h.b16 %v438
        %v881 = vunpack.c.l.b16 %v439
        %v882 = vunpack.c.h.b16 %v439
        %v883 = vunpack.c.l.b16 %v440
        %v884 = vunpack.c.h.b16 %v440
        %v885 = vunpack.c.l.b16 %v441
        %v886 = vunpack.c.h.b16 %v441
        %v887 = vunpack.c.l.b16 %v442
        %v888 = vunpack.c.h.b16 %v442
        %v889 = vunpack.c.l.b16 %v443
        %v890 = vunpack.c.h.b16 %v443
        %v891 = vunpack.c.l.b16 %v444
        %v892 = vunpack.c.h.b16 %v444
        %v893 = vunpack.c.l.b16 %v445
        %v894 = vunpack.c.h.b16 %v445
        %v895 = vunpack.c.l.b16 %v446
        %v896 = vunpack.c.h.b16 %v446
        %v897 = vunpack.c.l.b16 %v447
        %v898 = vunpack.c.h.b16 %v447
        %v899 = vunpack.c.l.b16 %v448
        %v900 = vunpack.c.h.b16 %v448
        %v901 = vunpack.c.l.b16 %v449
        %v902 = vunpack.c.h.b16 %v449
        %v903 = vunpack.c.l.b16 %v450
        %v904 = vunpack.c.h.b16 %v450
        %v905 = vunpack.c.l.b16 %v451
        %v906 = vunpack.c.h.b16 %v451
        %v907 = vunpack.c.l.b16 %v452
        %v908 = vunpack.c.h.b16 %v452
        %v909 = vunpack.c.l.b16 %v453
        %v910 = vunpack.c.h.b16 %v453
        %v911 = vunpack.c.l.b16 %v454
        %v912 = vunpack.c.h.b16 %v454
        %v913 = vunpack.c.l.b16 %v455
        %v914 = vunpack.c.h.b16 %v455
        %v915 = vunpack.c.l.b16 %v456
        %v916 = vunpack.c.h.b16 %v456
        %v917 = vunpack.c.l.b16 %v457
        %v918 = vunpack.c.h.b16 %v457
        %v919 = vunpack.c.l.b16 %v458
        %v920 = vunpack.c.h.b16 %v458
        %v921 = vunpack.c.l.b16 %v459
        %v922 = vunpack.c.h.b16 %v459
        %v923 = vunpack.c.l.b16 %v460
        %v924 = vunpack.c.h.b16 %v460
        %v925 = vunpack.c.l.b16 %v461
        %v926 = vunpack.c.h.b16 %v461
        %v927 = vunpack.c.l.b16 %v462
        %v928 = vunpack.c.h.b16 %v462
        %v929 = vunpack.c.l.b16 %v463
        %v930 = vunpack.c.h.b16 %v463
        %v931 = vunpack.c.l.b16 %v464
        %v932 = vunpack.c.h.b16 %v464
        %v933 = vunpack.c.l.b16 %v465
        %v934 = vunpack.c.h.b16 %v465
        %v935 = vunpack.c.l.b16 %v466
        %v936 = vunpack.c.h.b16 %v466
        %v937 = vunpack.c.l.b16 %v467
        %v938 = vunpack.c.h.b16 %v467
        %v939 = vunpack.c.l.b16 %v468
        %v940 = vunpack.c.h.b16 %v468
        %v941 = vunpack.c.l.b16 %v469
        %v942 = vunpack.c.h.b16 %v469
        %v943 = vunpack.c.l.b16 %v470
        %v944 = vunpack.c.h.b16 %v470
        %v945 = vunpack.c.l.b16 %v471
        %v946 = vunpack.c.h.b16 %v471
        %v947 = vunpack.c.l.b16 %v472
        %v948 = vunpack.c.h.b16 %v472
        %v949 = vunpack.c.l.b16 %v473
        %v950 = vunpack.c.h.b16 %v473
        %v951 = vunpack.c.l.b16 %v474
        %v952 = vunpack.c.h.b16 %v474
        %v953 = vpack.c.b16 %v701, %v697
        %v954 = vpack.c.b16 %v702, %v698
        %v955 = vpack.c.b16 %v703, %v699
        %v956 = vpack.c.b16 %v704, %v700
        %v957 = vpack.c.b16 %v709, %v705
        %v958 = vpack.c.b16 %v710, %v706
        %v959 = vpack.c.b16 %v711, %v707
        %v960 = vpack.c.b16 %v712, %v708
        %v961 = vpack.c.b16 %v717, %v713
        %v962 = vpack.c.b16 %v718, %v714
        %v963 = vpack.c.b16 %v719, %v715
        %v964 = vpack.c.b16 %v720, %v716
        %v965 = vpack.c.b16 %v725, %v721
        %v966 = vpack.c.b16 %v726, %v722
        %v967 = vpack.c.b16 %v727, %v723
        %v968 = vpack.c.b16 %v728, %v724
        %v969 = vpack.c.b16 %v733, %v729
        %v970 = vpack.c.b16 %v734, %v730
        %v971 = vpack.c.b16 %v735, %v731
        %v972 = vpack.c.b16 %v736, %v732
        %v973 = vpack.c.b16 %v741, %v737
        %v974 = vpack.c.b16 %v742, %v738
        %v975 = vpack.c.b16 %v743, %v739
        %v976 = vpack.c.b16 %v744, %v740
        %v977 = vpack.c.b16 %v749, %v745
        %v978 = vpack.c.b16 %v750, %v746
        %v979 = vpack.c.b16 %v751, %v747
        %v980 = vpack.c.b16 %v752, %v748
        %v981 = vpack.c.b16 %v757, %v753
        %v982 = vpack.c.b16 %v758, %v754
        %v983 = vpack.c.b16 %v759, %v755
        %v984 = vpack.c.b16 %v760, %v756
        %v985 = vpack.c.b16 %v765, %v761
        %v986 = vpack.c.b16 %v766, %v762
        %v987 = vpack.c.b16 %v767, %v763
        %v988 = vpack.c.b16 %v768, %v764
        %v989 = vpack.c.b16 %v773, %v769
        %v990 = vpack.c.b16 %v774, %v770
        %v991 = vpack.c.b16 %v775, %v771
        %v992 = vpack.c.b16 %v776, %v772
        %v993 = vpack.c.b16 %v781, %v777
        %v994 = vpack.c.b16 %v782, %v778
        %v995 = vpack.c.b16 %v783, %v779
        %v996 = vpack.c.b16 %v784, %v780
        %v997 = vpack.c.b16 %v789, %v785
        %v998 = vpack.c.b16 %v790, %v786
        %v999 = vpack.c.b16 %v791, %v787
        %v1000 = vpack.c.b16 %v792, %v788
        %v1001 = vpack.c.b16 %v797, %v793
        %v1002 = vpack.c.b16 %v798, %v794
        %v1003 = vpack.c.b16 %v799, %v795
        %v1004 = vpack.c.b16 %v800, %v796
        %v1005 = vpack.c.b16 %v805, %v801
        %v1006 = vpack.c.b16 %v806, %v802
        %v1007 = vpack.c.b16 %v807, %v803
        %v1008 = vpack.c.b16 %v808, %v804
        %v1009 = vpack.c.b16 %v813, %v809
        %v1010 = vpack.c.b16 %v814, %v810
        %v1011 = vpack.c.b16 %v815, %v811
        %v1012 = vpack.c.b16 %v816, %v812
        %v1013 = vpack.c.b16 %v821, %v817
        %v1014 = vpack.c.b16 %v822, %v818
        %v1015 = vpack.c.b16 %v823, %v819
        %v1016 = vpack.c.b16 %v824, %v820
        %v1017 = vpack.c.b16 %v829, %v825
        %v1018 = vpack.c.b16 %v830, %v826
        %v1019 = vpack.c.b16 %v831, %v827
        %v1020 = vpack.c.b16 %v832, %v828
        %v1021 = vpack.c.b16 %v837, %v833
        %v1022 = vpack.c.b16 %v838, %v834
        %v1023 = vpack.c.b16 %v839, %v835
        %v1024 = vpack.c.b16 %v840, %v836
        %v1025 = vpack.c.b16 %v845, %v841
        %v1026 = vpack.c.b16 %v846, %v842
        %v1027 = vpack.c.b16 %v847, %v843
        %v1028 = vpack.c.b16 %v848, %v844
        %v1029 = vpack.c.b16 %v853, %v849
        %v1030 = vpack.c.b16 %v854, %v850
        %v1031 = vpack.c.b16 %v855, %v851
        %v1032 = vpack.c.b16 %v856, %v852
        %v1033 = vpack.c.b16 %v861, %v857
        %v1034 = vpack.c.b16 %v862, %v858
        %v1035 = vpack.c.b16 %v863, %v859
        %v1036 = vpack.c.b16 %v864, %v860
        %v1037 = vpack.c.b16 %v869, %v865
        %v1038 = vpack.c.b16 %v870, %v866
        %v1039 = vpack.c.b16 %v871, %v867
        %v1040 = vpack.c.b16 %v872, %v868
        %v1041 = vpack.c.b16 %v877, %v873
        %v1042 = vpack.c.b16 %v878, %v874
        %v1043 = vpack.c.b16 %v879, %v875
        %v1044 = vpack.c.b16 %v880, %v876
        %v1045 = vpack.c.b16 %v885, %v881
        %v1046 = vpack.c.b16 %v886, %v882
        %v1047 = vpack.c.b16 %v887, %v883
        %v1048 = vpack.c.b16 %v888, %v884
        %v1049 = vpack.c.b16 %v893, %v889
        %v1050 = vpack.c.b16 %v894, %v890
        %v1051 = vpack.c.b16 %v895, %v891
        %v1052 = vpack.c.b16 %v896, %v892
        %v1053 = vpack.c.b16 %v901, %v897
        %v1054 = vpack.c.b16 %v902, %v898
        %v1055 = vpack.c.b16 %v903, %v899
        %v1056 = vpack.c.b16 %v904, %v900
        %v1057 = vpack.c.b16 %v909, %v905
        %v1058 = vpack.c.b16 %v910, %v906
        %v1059 = vpack.c.b16 %v911, %v907
        %v1060 = vpack.c.b16 %v912, %v908
        %v1061 = vpack.c.b16 %v917, %v913
        %v1062 = vpack.c.b16 %v918, %v914
        %v1063 = vpack.c.b16 %v919, %v915
        %v1064 = vpack.c.b16 %v920, %v916
        %v1065 = vpack.c.b16 %v925, %v921
        %v1066 = vpack.c.b16 %v926, %v922
        %v1067 = vpack.c.b16 %v927, %v923
        %v1068 = vpack.c.b16 %v928, %v924
        %v1069 = vpack.c.b16 %v933, %v929
        %v1070 = vpack.c.b16 %v934, %v930
        %v1071 = vpack.c.b16 %v935, %v931
        %v1072 = vpack.c.b16 %v936, %v932
        %v1073 = vpack.c.b16 %v941, %v937
        %v1074 = vpack.c.b16 %v942, %v938
        %v1075 = vpack.c.b16 %v943, %v939
        %v1076 = vpack.c.b16 %v944, %v940
        %v1077 = vpack.c.b16 %v949, %v945
        %v1078 = vpack.c.b16 %v950, %v946
        %v1079 = vpack.c.b16 %v951, %v947
        %v1080 = vpack.c.b16 %v952, %v948
        %1209 = vmatprep.subr.bf16.mxu0 %v982
        %1210 = vmatpush1.bf16.msra.mxu0 %v981
        %1211 = vmatprep.subr.bf16.mxu0 %v978
        %1212 = vmatpush1.bf16.msra.mxu0 %v977
        %1213 = vmatprep.subr.bf16.mxu0 %v974
        %1214 = vmatpush1.bf16.msra.mxu0 %v973
        %1215 = vmatprep.subr.bf16.mxu0 %v970
        %1216 = vmatpush1.bf16.msra.mxu0 %v969
        %1217 = vmatprep.subr.bf16.mxu0 %v966
        %1218 = vmatpush1.bf16.msra.mxu0 %v965
        %1219 = vmatprep.subr.bf16.mxu0 %v962
        %1220 = vmatpush1.bf16.msra.mxu0 %v961
        %1221 = vmatprep.subr.bf16.mxu0 %v958
        %1222 = vmatpush1.bf16.msra.mxu0 %v957
        %1223 = vmatprep.subr.bf16.mxu0 %v954
        %1224 = vmatpush1.bf16.msra.mxu0 %v953
        %1225 = vmatprep.subr.bf16.mxu0 %v1014
        %1226 = vmatpush2.bf16.msra.mxu0 %v1013
        %1227 = vmatprep.subr.bf16.mxu0 %v1010
        %1228 = vmatpush2.bf16.msra.mxu0 %v1009
        %1229 = vmatprep.subr.bf16.mxu0 %v1006
        %1230 = vmatpush2.bf16.msra.mxu0 %v1005
        %1231 = vmatprep.subr.bf16.mxu0 %v1002
        %1232 = vmatpush2.bf16.msra.mxu0 %v1001
        %1233 = vmatprep.subr.bf16.mxu0 %v998
        %1234 = vmatpush2.bf16.msra.mxu0 %v997
        %1235 = vmatprep.subr.bf16.mxu0 %v994
        %1236 = vmatpush2.bf16.msra.mxu0 %v993
        %1237 = vmatprep.subr.bf16.mxu0 %v990
        %1238 = vmatpush2.bf16.msra.mxu0 %v989
        %1239 = vmatprep.subr.bf16.mxu0 %v986
        %1240 = vmatpush2.bf16.msra.mxu0 %v985
        %1241 = vmatprep.mubr.bf16.mxu0 %v530
        %1242 = vmatmul.mubr.bf16.gmra.mxu0 %v529
        %v1243 = vpop.f32.mrf.mxu0
        %v1244 = vadd.f32 0.0, %v1243
        %v1245 = vpop.f32.mrf.mxu0
        %v1246 = vadd.f32 0.0, %v1245
        %v1247 = vpop.f32.mrf.mxu0
        %v1248 = vadd.f32 0.0, %v1247
        %v1249 = vpop.f32.mrf.mxu0
        %v1250 = vadd.f32 0.0, %v1249
        %1251 = vmatprep.mubr.bf16.mxu0 %v534
        %1252 = vmatmul.mubr.bf16.gmra.mxu0 %v533
        %v1253 = vpop.f32.mrf.mxu0
        %v1254 = vadd.f32 0.0, %v1253
        %v1255 = vpop.f32.mrf.mxu0
        %v1256 = vadd.f32 0.0, %v1255
        %v1257 = vpop.f32.mrf.mxu0
        %v1258 = vadd.f32 0.0, %v1257
        %v1259 = vpop.f32.mrf.mxu0
        %v1260 = vadd.f32 0.0, %v1259
        %1261 = vmatprep.mubr.bf16.mxu0 %v538
        %1262 = vmatmul.mubr.bf16.gmra.mxu0 %v537
        %v1263 = vpop.f32.mrf.mxu0
        %v1264 = vadd.f32 0.0, %v1263
        %v1265 = vpop.f32.mrf.mxu0
        %v1266 = vadd.f32 0.0, %v1265
        %v1267 = vpop.f32.mrf.mxu0
        %v1268 = vadd.f32 0.0, %v1267
        %v1269 = vpop.f32.mrf.mxu0
        %v1270 = vadd.f32 0.0, %v1269
        %1271 = vmatprep.mubr.bf16.mxu0 %v542
        %1272 = vmatmul.mubr.bf16.gmra.mxu0 %v541
        %v1273 = vpop.f32.mrf.mxu0
        %v1274 = vadd.f32 0.0, %v1273
        %v1275 = vpop.f32.mrf.mxu0
        %v1276 = vadd.f32 0.0, %v1275
        %v1277 = vpop.f32.mrf.mxu0
        %v1278 = vadd.f32 0.0, %v1277
        %v1279 = vpop.f32.mrf.mxu0
        %v1280 = vadd.f32 0.0, %v1279
        %1281 = vmatprep.mubr.bf16.mxu0 %v546
        %1282 = vmatmul.mubr.bf16.gmra.mxu0 %v545
        %v1283 = vpop.f32.mrf.mxu0
        %v1284 = vadd.f32 0.0, %v1283
        %v1285 = vpop.f32.mrf.mxu0
        %v1286 = vadd.f32 0.0, %v1285
        %v1287 = vpop.f32.mrf.mxu0
        %v1288 = vpop.f32.mrf.mxu0
        %1289 = vdwg.mxu0
        %1290 = vmatprep.subr.bf16.mxu0 %v1046
        %1291 = vmatpush1.bf16.msra.mxu0 %v1045
        %1292 = vmatprep.subr.bf16.mxu0 %v1042
        %1293 = vmatpush1.bf16.msra.mxu0 %v1041
        %1294 = vmatprep.subr.bf16.mxu0 %v1038
        %1295 = vmatpush1.bf16.msra.mxu0 %v1037
        %1296 = vmatprep.subr.bf16.mxu0 %v1034
        %1297 = vmatpush1.bf16.msra.mxu0 %v1033
        %1298 = vmatprep.subr.bf16.mxu0 %v1030
        %1299 = vmatpush1.bf16.msra.mxu0 %v1029
        %1300 = vmatprep.subr.bf16.mxu0 %v1026
        %1301 = vmatpush1.bf16.msra.mxu0 %v1025
        %1302 = vmatprep.subr.bf16.mxu0 %v1022
        %1303 = vmatpush1.bf16.msra.mxu0 %v1021
        %1304 = vmatprep.subr.bf16.mxu0 %v1018
        %1305 = vmatpush1.bf16.msra.mxu0 %v1017
        %1306 = vmatprep.subr.bf16.mxu0 %v1078
        %1307 = vmatpush2.bf16.msra.mxu0 %v1077
        %1308 = vmatprep.subr.bf16.mxu0 %v1074
        %1309 = vmatpush2.bf16.msra.mxu0 %v1073
        %1310 = vmatprep.subr.bf16.mxu0 %v1070
        %1311 = vmatpush2.bf16.msra.mxu0 %v1069
        %1312 = vmatprep.subr.bf16.mxu0 %v1066
        %1313 = vmatpush2.bf16.msra.mxu0 %v1065
        %1314 = vmatprep.subr.bf16.mxu0 %v1062
        %1315 = vmatpush2.bf16.msra.mxu0 %v1061
        %1316 = vmatprep.subr.bf16.mxu0 %v1058
        %1317 = vmatpush2.bf16.msra.mxu0 %v1057
        %1318 = vmatprep.subr.bf16.mxu0 %v1054
        %1319 = vmatpush2.bf16.msra.mxu0 %v1053
        %1320 = vmatprep.subr.bf16.mxu0 %v1050
        %1321 = vmatpush2.bf16.msra.mxu0 %v1049
        %1322 = vmatprep.mubr.bf16.mxu0 %v532
        %1323 = vmatmul.mubr.bf16.gmra.mxu0 %v531
        %v1324 = vpop.f32.mrf.mxu0
        %v1325 = vadd.f32 %v1244, %v1324
        %v1326 = vpop.f32.mrf.mxu0
        %v1327 = vadd.f32 %v1246, %v1326
        %v1328 = vpop.f32.mrf.mxu0
        %v1329 = vadd.f32 %v1248, %v1328
        %v1330 = vpop.f32.mrf.mxu0
        %v1331 = vadd.f32 %v1250, %v1330
        %1332 = vmatprep.mubr.bf16.mxu0 %v536
        %1333 = vmatmul.mubr.bf16.gmra.mxu0 %v535
        %v1334 = vpop.f32.mrf.mxu0
        %v1335 = vadd.f32 %v1254, %v1334
        %v1336 = vpop.f32.mrf.mxu0
        %v1337 = vadd.f32 %v1256, %v1336
        %v1338 = vpop.f32.mrf.mxu0
        %v1339 = vadd.f32 %v1258, %v1338
        %v1340 = vpop.f32.mrf.mxu0
        %v1341 = vadd.f32 %v1260, %v1340
        %1342 = vmatprep.mubr.bf16.mxu0 %v540
        %1343 = vmatmul.mubr.bf16.gmra.mxu0 %v539
        %v1344 = vpop.f32.mrf.mxu0
        %v1345 = vadd.f32 %v1264, %v1344
        %v1346 = vpop.f32.mrf.mxu0
        %v1347 = vadd.f32 %v1266, %v1346
        %v1348 = vpop.f32.mrf.mxu0
        %v1349 = vadd.f32 %v1268, %v1348
        %v1350 = vpop.f32.mrf.mxu0
        %v1351 = vadd.f32 %v1270, %v1350
        %1352 = vmatprep.mubr.bf16.mxu0 %v544
        %1353 = vmatmul.mubr.bf16.gmra.mxu0 %v543
        %v1354 = vpop.f32.mrf.mxu0
        %v1355 = vadd.f32 %v1274, %v1354
        %v1356 = vpop.f32.mrf.mxu0
        %v1357 = vadd.f32 %v1276, %v1356
        %v1358 = vpop.f32.mrf.mxu0
        %v1359 = vadd.f32 %v1278, %v1358
        %v1360 = vpop.f32.mrf.mxu0
        %v1361 = vadd.f32 %v1280, %v1360
        %1362 = vmatprep.mubr.bf16.mxu0 %v548
        %1363 = vmatmul.mubr.bf16.gmra.mxu0 %v547
        %v1364 = vpop.f32.mrf.mxu0
        %v1365 = vadd.f32 %v1284, %v1364
        %v1366 = vpop.f32.mrf.mxu0
        %v1367 = vadd.f32 %v1286, %v1366
        %v1368 = vpop.f32.mrf.mxu0
        %v1369 = vpop.f32.mrf.mxu0
        %1370 = vdwg.mxu0
        %1371 = vmatprep.subr.bf16.mxu0 %v984
        %1372 = vmatpush1.bf16.msra.mxu0 %v983
        %1373 = vmatprep.subr.bf16.mxu0 %v980
        %1374 = vmatpush1.bf16.msra.mxu0 %v979
        %1375 = vmatprep.subr.bf16.mxu0 %v976
        %1376 = vmatpush1.bf16.msra.mxu0 %v975
        %1377 = vmatprep.subr.bf16.mxu0 %v972
        %1378 = vmatpush1.bf16.msra.mxu0 %v971
        %1379 = vmatprep.subr.bf16.mxu0 %v968
        %1380 = vmatpush1.bf16.msra.mxu0 %v967
        %1381 = vmatprep.subr.bf16.mxu0 %v964
        %1382 = vmatpush1.bf16.msra.mxu0 %v963
        %1383 = vmatprep.subr.bf16.mxu0 %v960
        %1384 = vmatpush1.bf16.msra.mxu0 %v959
        %1385 = vmatprep.subr.bf16.mxu0 %v956
        %1386 = vmatpush1.bf16.msra.mxu0 %v955
        %1387 = vmatprep.subr.bf16.mxu0 %v1016
        %1388 = vmatpush2.bf16.msra.mxu0 %v1015
        %1389 = vmatprep.subr.bf16.mxu0 %v1012
        %1390 = vmatpush2.bf16.msra.mxu0 %v1011
        %1391 = vmatprep.subr.bf16.mxu0 %v1008
        %1392 = vmatpush2.bf16.msra.mxu0 %v1007
        %1393 = vmatprep.subr.bf16.mxu0 %v1004
        %1394 = vmatpush2.bf16.msra.mxu0 %v1003
        %1395 = vmatprep.subr.bf16.mxu0 %v1000
        %1396 = vmatpush2.bf16.msra.mxu0 %v999
        %1397 = vmatprep.subr.bf16.mxu0 %v996
        %1398 = vmatpush2.bf16.msra.mxu0 %v995
        %1399 = vmatprep.subr.bf16.mxu0 %v992
        %1400 = vmatpush2.bf16.msra.mxu0 %v991
        %1401 = vmatprep.subr.bf16.mxu0 %v988
        %1402 = vmatpush2.bf16.msra.mxu0 %v987
        %1403 = vmatprep.mubr.bf16.mxu0 %v530
        %1404 = vmatmul.mubr.bf16.gmra.mxu0 %v529
        %v1405 = vpop.f32.mrf.mxu0
        %v1406 = vadd.f32 0.0, %v1405
        %v1407 = vpop.f32.mrf.mxu0
        %v1408 = vadd.f32 0.0, %v1407
        %v1409 = vpop.f32.mrf.mxu0
        %v1410 = vadd.f32 0.0, %v1409
        %v1411 = vpop.f32.mrf.mxu0
        %v1412 = vadd.f32 0.0, %v1411
        %1413 = vmatprep.mubr.bf16.mxu0 %v534
        %1414 = vmatmul.mubr.bf16.gmra.mxu0 %v533
        %v1415 = vpop.f32.mrf.mxu0
        %v1416 = vadd.f32 0.0, %v1415
        %v1417 = vpop.f32.mrf.mxu0
        %v1418 = vadd.f32 0.0, %v1417
        %v1419 = vpop.f32.mrf.mxu0
        %v1420 = vadd.f32 0.0, %v1419
        %v1421 = vpop.f32.mrf.mxu0
        %v1422 = vadd.f32 0.0, %v1421
        %1423 = vmatprep.mubr.bf16.mxu0 %v538
        %1424 = vmatmul.mubr.bf16.gmra.mxu0 %v537
        %v1425 = vpop.f32.mrf.mxu0
        %v1426 = vadd.f32 0.0, %v1425
        %v1427 = vpop.f32.mrf.mxu0
        %v1428 = vadd.f32 0.0, %v1427
        %v1429 = vpop.f32.mrf.mxu0
        %v1430 = vadd.f32 0.0, %v1429
        %v1431 = vpop.f32.mrf.mxu0
        %v1432 = vadd.f32 0.0, %v1431
        %1433 = vmatprep.mubr.bf16.mxu0 %v542
        %1434 = vmatmul.mubr.bf16.gmra.mxu0 %v541
        %v1435 = vpop.f32.mrf.mxu0
        %v1436 = vadd.f32 0.0, %v1435
        %v1437 = vpop.f32.mrf.mxu0
        %v1438 = vadd.f32 0.0, %v1437
        %v1439 = vpop.f32.mrf.mxu0
        %v1440 = vadd.f32 0.0, %v1439
        %v1441 = vpop.f32.mrf.mxu0
        %v1442 = vadd.f32 0.0, %v1441
        %1443 = vmatprep.mubr.bf16.mxu0 %v546
        %1444 = vmatmul.mubr.bf16.gmra.mxu0 %v545
        %v1445 = vpop.f32.mrf.mxu0
        %v1446 = vadd.f32 0.0, %v1445
        %v1447 = vpop.f32.mrf.mxu0
        %v1448 = vadd.f32 0.0, %v1447
        %v1449 = vpop.f32.mrf.mxu0
        %v1450 = vpop.f32.mrf.mxu0
        %1451 = vdwg.mxu0
        %1452 = vmatprep.subr.bf16.mxu0 %v1048
        %1453 = vmatpush1.bf16.msra.mxu0 %v1047
        %1454 = vmatprep.subr.bf16.mxu0 %v1044
        %1455 = vmatpush1.bf16.msra.mxu0 %v1043
        %1456 = vmatprep.subr.bf16.mxu0 %v1040
        %1457 = vmatpush1.bf16.msra.mxu0 %v1039
        %1458 = vmatprep.subr.bf16.mxu0 %v1036
        %1459 = vmatpush1.bf16.msra.mxu0 %v1035
        %1460 = vmatprep.subr.bf16.mxu0 %v1032
        %1461 = vmatpush1.bf16.msra.mxu0 %v1031
        %1462 = vmatprep.subr.bf16.mxu0 %v1028
        %1463 = vmatpush1.bf16.msra.mxu0 %v1027
        %1464 = vmatprep.subr.bf16.mxu0 %v1024
        %1465 = vmatpush1.bf16.msra.mxu0 %v1023
        %1466 = vmatprep.subr.bf16.mxu0 %v1020
        %1467 = vmatpush1.bf16.msra.mxu0 %v1019
        %1468 = vmatprep.subr.bf16.mxu0 %v1080
        %1469 = vmatpush2.bf16.msra.mxu0 %v1079
        %1470 = vmatprep.subr.bf16.mxu0 %v1076
        %1471 = vmatpush2.bf16.msra.mxu0 %v1075
        %1472 = vmatprep.subr.bf16.mxu0 %v1072
        %1473 = vmatpush2.bf16.msra.mxu0 %v1071
        %1474 = vmatprep.subr.bf16.mxu0 %v1068
        %1475 = vmatpush2.bf16.msra.mxu0 %v1067
        %1476 = vmatprep.subr.bf16.mxu0 %v1064
        %1477 = vmatpush2.bf16.msra.mxu0 %v1063
        %1478 = vmatprep.subr.bf16.mxu0 %v1060
        %1479 = vmatpush2.bf16.msra.mxu0 %v1059
        %1480 = vmatprep.subr.bf16.mxu0 %v1056
        %1481 = vmatpush2.bf16.msra.mxu0 %v1055
        %1482 = vmatprep.subr.bf16.mxu0 %v1052
        %1483 = vmatpush2.bf16.msra.mxu0 %v1051
        %1484 = vmatprep.mubr.bf16.mxu0 %v532
        %1485 = vmatmul.mubr.bf16.gmra.mxu0 %v531
        %v1486 = vpop.f32.mrf.mxu0
        %v1487 = vadd.f32 %v1406, %v1486
        %v1488 = vpop.f32.mrf.mxu0
        %v1489 = vadd.f32 %v1408, %v1488
        %v1490 = vpop.f32.mrf.mxu0
        %v1491 = vadd.f32 %v1410, %v1490
        %v1492 = vpop.f32.mrf.mxu0
        %v1493 = vadd.f32 %v1412, %v1492
        %1494 = vmatprep.mubr.bf16.mxu0 %v536
        %1495 = vmatmul.mubr.bf16.gmra.mxu0 %v535
        %v1496 = vpop.f32.mrf.mxu0
        %v1497 = vadd.f32 %v1416, %v1496
        %v1498 = vpop.f32.mrf.mxu0
        %v1499 = vadd.f32 %v1418, %v1498
        %v1500 = vpop.f32.mrf.mxu0
        %v1501 = vadd.f32 %v1420, %v1500
        %v1502 = vpop.f32.mrf.mxu0
        %v1503 = vadd.f32 %v1422, %v1502
        %1504 = vmatprep.mubr.bf16.mxu0 %v540
        %1505 = vmatmul.mubr.bf16.gmra.mxu0 %v539
        %v1506 = vpop.f32.mrf.mxu0
        %v1507 = vadd.f32 %v1426, %v1506
        %v1508 = vpop.f32.mrf.mxu0
        %v1509 = vadd.f32 %v1428, %v1508
        %v1510 = vpop.f32.mrf.mxu0
        %v1511 = vadd.f32 %v1430, %v1510
        %v1512 = vpop.f32.mrf.mxu0
        %v1513 = vadd.f32 %v1432, %v1512
        %1514 = vmatprep.mubr.bf16.mxu0 %v544
        %1515 = vmatmul.mubr.bf16.gmra.mxu0 %v543
        %v1516 = vpop.f32.mrf.mxu0
        %v1517 = vadd.f32 %v1436, %v1516
        %v1518 = vpop.f32.mrf.mxu0
        %v1519 = vadd.f32 %v1438, %v1518
        %v1520 = vpop.f32.mrf.mxu0
        %v1521 = vadd.f32 %v1440, %v1520
        %v1522 = vpop.f32.mrf.mxu0
        %v1523 = vadd.f32 %v1442, %v1522
        %1524 = vmatprep.mubr.bf16.mxu0 %v548
        %1525 = vmatmul.mubr.bf16.gmra.mxu0 %v547
        %v1526 = vpop.f32.mrf.mxu0
        %v1527 = vadd.f32 %v1446, %v1526
        %v1528 = vpop.f32.mrf.mxu0
        %v1529 = vadd.f32 %v1448, %v1528
        %v1530 = vpop.f32.mrf.mxu0
        %v1531 = vpop.f32.mrf.mxu0
        %1532 = vdwg.mxu0
        %v1533 = vld [vmem:[%s280] sm:$0xf]
        %v1535 = vlaneseq
        %v1536 = vshrl.u32 %v1535, 7
        %v1537 = vsub.s32 0, %v1536
        %v1538 = vrot.slane %v1533, %v1537
        %v1539 = vlaneseq
        %v1540 = vshrl.u32 %v1539, 7
        %v1541 = vsub.s32 1, %v1540
        %v1542 = vrot.slane %v1533, %v1541
        %v1543 = vlaneseq
        %v1544 = vshrl.u32 %v1543, 7
        %v1545 = vsub.s32 2, %v1544
        %v1546 = vrot.slane %v1533, %v1545
        %v1547 = vlaneseq
        %v1548 = vshrl.u32 %v1547, 7
        %v1549 = vsub.s32 3, %v1548
        %v1550 = vrot.slane %v1533, %v1549
        %v1555 = vmul.f32 %v1325, %v1538
        %v1556 = vmul.f32 %v1327, %v1542
        %v1557 = vmul.f32 %v1487, %v1546
        %v1558 = vmul.f32 %v1489, %v1550
        %v1559 = vmul.f32 %v1329, %v1538
        %v1560 = vmul.f32 %v1331, %v1542
        %v1561 = vmul.f32 %v1491, %v1546
        %v1562 = vmul.f32 %v1493, %v1550
        %v1563 = vmul.f32 %v1335, %v1538
        %v1564 = vmul.f32 %v1337, %v1542
        %v1565 = vmul.f32 %v1497, %v1546
        %v1566 = vmul.f32 %v1499, %v1550
        %v1567 = vmul.f32 %v1339, %v1538
        %v1568 = vmul.f32 %v1341, %v1542
        %v1569 = vmul.f32 %v1501, %v1546
        %v1570 = vmul.f32 %v1503, %v1550
        %v1571 = vmul.f32 %v1345, %v1538
        %v1572 = vmul.f32 %v1347, %v1542
        %v1573 = vmul.f32 %v1507, %v1546
        %v1574 = vmul.f32 %v1509, %v1550
        %v1575 = vmul.f32 %v1349, %v1538
        %v1576 = vmul.f32 %v1351, %v1542
        %v1577 = vmul.f32 %v1511, %v1546
        %v1578 = vmul.f32 %v1513, %v1550
        %v1579 = vmul.f32 %v1355, %v1538
        %v1580 = vmul.f32 %v1357, %v1542
        %v1581 = vmul.f32 %v1517, %v1546
        %v1582 = vmul.f32 %v1519, %v1550
        %v1583 = vmul.f32 %v1359, %v1538
        %v1584 = vmul.f32 %v1361, %v1542
        %v1585 = vmul.f32 %v1521, %v1546
        %v1586 = vmul.f32 %v1523, %v1550
        %v1587 = vmul.f32 %v1365, %v1538
        %v1588 = vmul.f32 %v1367, %v1542
        %v1589 = vmul.f32 %v1527, %v1546
        %v1590 = vmul.f32 %v1529, %v1550
        %v1591 = vld [vmem:[%s289] sm:$0xf]
        %v1593 = vlaneseq
        %v1594 = vshrl.u32 %v1593, 7
        %v1595 = vsub.s32 0, %v1594
        %v1596 = vrot.slane %v1591, %v1595
        %v1597 = vlaneseq
        %v1598 = vshrl.u32 %v1597, 7
        %v1599 = vsub.s32 1, %v1598
        %v1600 = vrot.slane %v1591, %v1599
        %v1601 = vlaneseq
        %v1602 = vshrl.u32 %v1601, 7
        %v1603 = vsub.s32 2, %v1602
        %v1604 = vrot.slane %v1591, %v1603
        %v1605 = vlaneseq
        %v1606 = vshrl.u32 %v1605, 7
        %v1607 = vsub.s32 3, %v1606
        %v1608 = vrot.slane %v1591, %v1607
        %v1613 = vadd.f32 %v1555, %v1596
        %v1614 = vadd.f32 %v1556, %v1600
        %v1615 = vadd.f32 %v1557, %v1604
        %v1616 = vadd.f32 %v1558, %v1608
        %v1617 = vadd.f32 %v1559, %v1596
        %v1618 = vadd.f32 %v1560, %v1600
        %v1619 = vadd.f32 %v1561, %v1604
        %v1620 = vadd.f32 %v1562, %v1608
        %v1621 = vadd.f32 %v1563, %v1596
        %v1622 = vadd.f32 %v1564, %v1600
        %v1623 = vadd.f32 %v1565, %v1604
        %v1624 = vadd.f32 %v1566, %v1608
        %v1625 = vadd.f32 %v1567, %v1596
        %v1626 = vadd.f32 %v1568, %v1600
        %v1627 = vadd.f32 %v1569, %v1604
        %v1628 = vadd.f32 %v1570, %v1608
        %v1629 = vadd.f32 %v1571, %v1596
        %v1630 = vadd.f32 %v1572, %v1600
        %v1631 = vadd.f32 %v1573, %v1604
        %v1632 = vadd.f32 %v1574, %v1608
        %v1633 = vadd.f32 %v1575, %v1596
        %v1634 = vadd.f32 %v1576, %v1600
        %v1635 = vadd.f32 %v1577, %v1604
        %v1636 = vadd.f32 %v1578, %v1608
        %v1637 = vadd.f32 %v1579, %v1596
        %v1638 = vadd.f32 %v1580, %v1600
        %v1639 = vadd.f32 %v1581, %v1604
        %v1640 = vadd.f32 %v1582, %v1608
        %v1641 = vadd.f32 %v1583, %v1596
        %v1642 = vadd.f32 %v1584, %v1600
        %v1643 = vadd.f32 %v1585, %v1604
        %v1644 = vadd.f32 %v1586, %v1608
        %v1645 = vadd.f32 %v1587, %v1596
        %v1646 = vadd.f32 %v1588, %v1600
        %v1647 = vadd.f32 %v1589, %v1604
        %v1648 = vadd.f32 %v1590, %v1608
        %v1649 = vmax.f32 %v1613, 0.0
        %v1650 = vmax.f32 %v1614, 0.0
        %v1651 = vmax.f32 %v1615, 0.0
        %v1652 = vmax.f32 %v1616, 0.0
        %v1653 = vmax.f32 %v1617, 0.0
        %v1654 = vmax.f32 %v1618, 0.0
        %v1655 = vmax.f32 %v1619, 0.0
        %v1656 = vmax.f32 %v1620, 0.0
        %v1657 = vmax.f32 %v1621, 0.0
        %v1658 = vmax.f32 %v1622, 0.0
        %v1659 = vmax.f32 %v1623, 0.0
        %v1660 = vmax.f32 %v1624, 0.0
        %v1661 = vmax.f32 %v1625, 0.0
        %v1662 = vmax.f32 %v1626, 0.0
        %v1663 = vmax.f32 %v1627, 0.0
        %v1664 = vmax.f32 %v1628, 0.0
        %v1665 = vmax.f32 %v1629, 0.0
        %v1666 = vmax.f32 %v1630, 0.0
        %v1667 = vmax.f32 %v1631, 0.0
        %v1668 = vmax.f32 %v1632, 0.0
        %v1669 = vmax.f32 %v1633, 0.0
        %v1670 = vmax.f32 %v1634, 0.0
        %v1671 = vmax.f32 %v1635, 0.0
        %v1672 = vmax.f32 %v1636, 0.0
        %v1673 = vmax.f32 %v1637, 0.0
        %v1674 = vmax.f32 %v1638, 0.0
        %v1675 = vmax.f32 %v1639, 0.0
        %v1676 = vmax.f32 %v1640, 0.0
        %v1677 = vmax.f32 %v1641, 0.0
        %v1678 = vmax.f32 %v1642, 0.0
        %v1679 = vmax.f32 %v1643, 0.0
        %v1680 = vmax.f32 %v1644, 0.0
        %v1681 = vmax.f32 %v1645, 0.0
        %v1682 = vmax.f32 %v1646, 0.0
        %v1683 = vmax.f32 %v1647, 0.0
        %v1684 = vmax.f32 %v1648, 0.0
        %1685 = vst [vmem:[%s328] sm:$0xff] %v1649
        %1686 = vst [vmem:[%s328 + $0x8] sm:$0xff] %v1650
        %1687 = vst [vmem:[%s328 + $0x10] sm:$0xff] %v1651
        %1688 = vst [vmem:[%s328 + $0x18] sm:$0xff] %v1652
        %1689 = vst [vmem:[%s328 + $0x20] sm:$0xff] %v1653
        %1690 = vst [vmem:[%s328 + $0x28] sm:$0xff] %v1654
        %1691 = vst [vmem:[%s328 + $0x30] sm:$0xff] %v1655
        %1692 = vst [vmem:[%s328 + $0x38] sm:$0xff] %v1656
        %1693 = vst [vmem:[%s328 + $0x40] sm:$0xff] %v1657
        %1694 = vst [vmem:[%s328 + $0x48] sm:$0xff] %v1658
        %1695 = vst [vmem:[%s328 + $0x50] sm:$0xff] %v1659
        %1696 = vst [vmem:[%s328 + $0x58] sm:$0xff] %v1660
        %1697 = vst [vmem:[%s328 + $0x60] sm:$0xff] %v1661
        %1698 = vst [vmem:[%s328 + $0x68] sm:$0xff] %v1662
        %1699 = vst [vmem:[%s328 + $0x70] sm:$0xff] %v1663
        %1700 = vst [vmem:[%s328 + $0x78] sm:$0xff] %v1664
        %1701 = vst [vmem:[%s328 + $0x80] sm:$0xff] %v1665
        %1702 = vst [vmem:[%s328 + $0x88] sm:$0xff] %v1666
        %1703 = vst [vmem:[%s328 + $0x90] sm:$0xff] %v1667
        %1704 = vst [vmem:[%s328 + $0x98] sm:$0xff] %v1668
        %1705 = vst [vmem:[%s328 + $0xa0] sm:$0xff] %v1669
        %1706 = vst [vmem:[%s328 + $0xa8] sm:$0xff] %v1670
        %1707 = vst [vmem:[%s328 + $0xb0] sm:$0xff] %v1671
        %1708 = vst [vmem:[%s328 + $0xb8] sm:$0xff] %v1672
        %1709 = vst [vmem:[%s328 + $0xc0] sm:$0xff] %v1673
        %1710 = vst [vmem:[%s328 + $0xc8] sm:$0xff] %v1674
        %1711 = vst [vmem:[%s328 + $0xd0] sm:$0xff] %v1675
        %1712 = vst [vmem:[%s328 + $0xd8] sm:$0xff] %v1676
        %1713 = vst [vmem:[%s328 + $0xe0] sm:$0xff] %v1677
        %1714 = vst [vmem:[%s328 + $0xe8] sm:$0xff] %v1678
        %1715 = vst [vmem:[%s328 + $0xf0] sm:$0xff] %v1679
        %1716 = vst [vmem:[%s328 + $0xf8] sm:$0xff] %v1680
        %1717 = vst [vmem:[%s328 + $0x100] sm:$0xff] %v1681
        %1718 = vst [vmem:[%s328 + $0x108] sm:$0xff] %v1682
        %1719 = vst [vmem:[%s328 + $0x110] sm:$0xff] %v1683
        %1720 = vst [vmem:[%s328 + $0x118] sm:$0xff] %v1684
        %s1721 = sand.u32 %s139, 1
        %s1722 = scalar_lea.sflag [#allocation4], %s1721
        %s1723 = sand.u32 %s139, 1
        %s1724 = smul.addr %s1723, 288
        %s1725 = scalar_lea.vmem [#allocation10], %s1724
        // Predicated region
        $region53: #{tpu_custom_call.1} parent=35 // pred_check
          %p1726 = pneg %p149
        $region54: #{tpu_custom_call.1} parent=35 // pred_check_branch
          %1728 = sbr.rel (%p1726) target = $region56
        $region55: #{tpu_custom_call.1} parent=35 // pred_region
          %s1730 = ssub.s32 4608, 4608
          %1731 = vsyncadd %s1722, %s1730
          %s1732 = smul.addr %s27, 36
          %s1733 = smul.addr %s1732, 128
          %s1734 = scalar_lea.hbm %s4, %s1733
          %s1735 = sshll.u32 %s1725, 4
          %s1736 = int_to_ptr.vmem [resolvable:$true] %s1735
          %1741 = dma.vmem_to_hbm [thread:$0]  %s1736, 4608, %s1734, %s1722, 512, 512, 32
        $region56: #{tpu_custom_call.1} parent=35 // pred_fallthru
          _
      $region36: #{tpu_custom_call.1} parent=5 // pred_fallthru
        _
      %p1742 = scmp.le.s32.totalorder 2, %s22
      // Predicated region
      $region57: #{tpu_custom_call.1} parent=5 // pred_check
        %p1743 = pneg %p1742
      $region58: #{tpu_custom_call.1} parent=5 // pred_check_branch
        %1745 = sbr.rel (%p1743) target = $region60
      $region59: #{tpu_custom_call.1} parent=5 // pred_region
        %s1746 = ssub.s32 %s22, 2
        // Predicated region
        $region61: #{tpu_custom_call.1} parent=59 // pred_check
          %p1747 = pneg %p155
        $region62: #{tpu_custom_call.1} parent=59 // pred_check_branch
          %1749 = sbr.rel (%p1747) target = $region64
        $region63: #{tpu_custom_call.1} parent=59 // pred_region
          %s1750 = sand.u32 %s140, 1
          %s1751 = scalar_lea.sflag [#allocation4], %s1750
          %s1752 = sand.u32 %s140, 1
          %s1753 = smul.addr %s1752, 288
          %s1754 = scalar_lea.vmem [#allocation10], %s1753
          %1755 = dma.done %s1751, 4608
        $region64: #{tpu_custom_call.1} parent=59 // pred_fallthru
          _
      $region60: #{tpu_custom_call.1} parent=5 // pred_fallthru
        _
    $region6: #{tpu_custom_call.1} parent=1 // loop_footer
      %s26 = sadd.s32 1, %s22
    $region7: #{tpu_custom_call.1} parent=1 // loop_footer_branch
      %21 = sbr.rel target = $region3
    $region8: #{tpu_custom_call.1} parent=1 // loop_exit
      _
    %1756 = vsyncpa [#allocation3], 1
    %s1757 = scalar_lea.sflag [#allocation3], 1
    %1758 = vsyncpa %s1757, 1
    %1759 = vsyncpa [#allocation6], 1
    %s1760 = scalar_lea.sflag [#allocation6], 1
    %1761 = vsyncpa %s1760, 1
    %1762 = vsyncpa [#allocation9], 1
    %s1763 = scalar_lea.sflag [#allocation9], 1
    %1764 = vsyncpa %s1763, 1
    %1765 = vsyncpa [#allocation4], 1
    %s1766 = scalar_lea.sflag [#allocation4], 1
    %1767 = vsyncpa %s1766, 1

</llo_original>
